<compile_context>
chip_gen: v5e
topology: v5e:2x2
jax: 0.10.0
libtpu: 0.0.40
codegen_flags: <defaults>
</compile_context>

<pallas_src>
import jax
import jax.numpy as jnp
from jax.experimental import pallas as pl
from jax.experimental.pallas import tpu as pltpu


def _round_up(x: int, m: int) -> int:
    return ((x + m - 1) // m) * m


def _tpu_generation() -> str:
    try:
        kind = jax.devices()[0].device_kind.lower()
    except Exception:  # pragma: no cover - defensive only
        return "unknown"
    if "7" in kind:
        return "v7x"
    if "v6" in kind:
        return "v6e"
    if "v5" in kind and ("lite" in kind or "v5e" in kind):
        return "v5e"
    return "other"


def _vmem_estimate_bytes(tb, n, v, e_pad, *, in_bytes=2, weight_buffers=1):
    """Per-grid-step VMEM footprint: bf16 inputs, f32 accumulation path."""
    v_l = _round_up(v, 128)                  # lane padding of the vocab dim in VMEM
    rows = tb * n
    io_in = 2 * in_bytes * (tb * v_l + 2 * rows * v_l)       # q, k, v blocks (double-buffered)
    io_out = 2 * 4 * tb * e_pad                               # f32 output block (double-buffered)
    weights = weight_buffers * (in_bytes * _round_up(v, 16) * e_pad + 4 * 8 * e_pad)
    interm = (in_bytes * (rows + tb) * v_l                    # concatenated matmul LHS
              + 2 * 4 * (rows + tb) * e_pad                   # emb + reshaped k_emb
              + 2 * 4 * rows * v_l                            # f32 upcast of values (+reshape)
              + 4 * tb * (v_l + 2 * e_pad))                   # ctx / q_emb / out
    return io_in + io_out + weights + interm


def kv_memnet_kernel(q_ref, k_ref, v_ref, w_ref, b_ref, o_ref):
    # q_ref: (TB, V) bf16      k_ref/v_ref: (TB*N, V) bf16 (batch-major flattened)
    # w_ref: (V, Ep) bf16      b_ref: (1, Ep) f32           o_ref: (TB, Ep)
    tb, vdim = q_ref.shape
    n = k_ref.shape[0] // tb
    e_pad = w_ref.shape[1]

    w = w_ref[...]                      # (V, Ep) bf16, resident in VMEM
    bias = b_ref[...]                   # (1, Ep) f32

    # --- one fused MXU pass for key + question embeddings through layer A ---
    #   rows [0, TB*N)        -> key embeddings
    #   rows [TB*N, TB*(N+1)) -> question embeddings  (TB % 16 == 0 keeps it aligned)
    lhs = jnp.concatenate([k_ref[...], q_ref[...]], axis=0)             # (TB*(N+1), V) bf16
    emb = jnp.dot(lhs, w, preferred_element_type=jnp.float32) + bias    # (TB*(N+1), Ep) f32
    k_emb = emb[: tb * n].reshape(tb, n, e_pad)                         # (TB, N, Ep) f32
    q_emb = emb[tb * n:]                                                # (TB, Ep)    f32

    # --- attention scores on the VPU + XLU (an M=1 batched matmul would waste the MXU) ---
    scores = jnp.sum(q_emb[:, None, :] * k_emb, axis=-1)                # (TB, N) f32
    m = jnp.max(scores, axis=-1, keepdims=True)
    p = jnp.exp(scores - m)
    attn = p * pl.reciprocal(jnp.sum(p, axis=-1, keepdims=True), approx=True)

    # --- factored value path: attn @ (vW + b) == (attn @ v) W + b  (rows sum to 1) ---
    v32 = v_ref[...].astype(jnp.float32).reshape(tb, n, vdim)           # f32 elementwise path
    ctx = jnp.sum(attn[:, :, None] * v32, axis=1)                       # (TB, V) f32
    out = jnp.dot(ctx.astype(w.dtype), w, preferred_element_type=jnp.float32) + bias
    o_ref[...] = out.astype(o_ref.dtype)


def _pad_rows_cast(x, rows, dtype):
    """Cast to `dtype` and zero-pad the leading dim to `rows` in a single fused pass."""
    xc = x.astype(dtype)
    if xc.shape[0] == rows:
        return xc
    return jnp.pad(xc, ((0, rows - xc.shape[0]),) + ((0, 0),) * (xc.ndim - 1))


def kv_memory_network(question, keys, values, w_a, b_a, *,
                      batch_tile=None,
                      param_dtype=jnp.bfloat16,
                      kv_buffers=None):
    """question: (B, V), keys/values: (B, N, V), w_a: (V, E), b_a: (E,) -> (B, E).

    kv_buffers: optional buffer count for the keys/values blocks (e.g. 3 on
    v5e/v6e if profiling shows exposed DMA at step boundaries; keep default on v7x).
    """
    B, V = question.shape
    _, N, _ = keys.shape
    E = w_a.shape[1]
    Ep = _round_up(E, 128)

    # ---- generation-dependent tiling knobs ----
    gen = _tpu_generation()
    if gen == "v7x":      # 64 MiB per-TC VMEM, 2 TensorCores, 256-wide MXU
        vmem_budget, vmem_cap, scoped_default, target_m = 36 << 20, 48 << 20, 32 << 20, 256
    elif gen == "v5e":    # 128 MiB VMEM, 16 MiB default scoped limit, 128-wide MXU
        vmem_budget, vmem_cap, scoped_default, target_m = 56 << 20, 100 << 20, 16 << 20, 128
    else:                 # v6e & other: 128 MiB VMEM, 256-wide MXU
        vmem_budget, vmem_cap, scoped_default, target_m = 56 << 20, 100 << 20, 32 << 20, 256

    in_bytes = jnp.dtype(param_dtype).itemsize
    tb_align = 16 if in_bytes < 4 else 8

    if batch_tile is None:
        batch_tile = max(tb_align, target_m // max(N, 1))   # aim M = TB*N at the MXU width
    bp_min = _round_up(B, tb_align)
    tb = max(tb_align, _round_up(min(batch_tile, bp_min), tb_align))
    # v7x: keep the parallel batch grid >= 2 steps so both TensorCores get work.
    if gen == "v7x" and tb >= bp_min and bp_min >= 2 * tb_align:
        tb = max(tb_align, _round_up((bp_min + 1) // 2, tb_align))
    while tb > tb_align and _vmem_estimate_bytes(tb, N, V, Ep, in_bytes=in_bytes) > vmem_budget:
        tb -= tb_align
    Bp = _round_up(B, tb)

    est = _vmem_estimate_bytes(tb, N, V, Ep, in_bytes=in_bytes)
    vmem_limit = None
    if est > scoped_default - (4 << 20):
        vmem_limit = int(min(max(est * 3 // 2, scoped_default), vmem_cap))

    # ---- HBM-side prep: bf16 cast fused with batch padding; NO lane (Vp) padding,
    #      keys/values flattened to (B*N, V) so the kernel never reshapes a bf16 tile.
    q_p = _pad_rows_cast(question, Bp, param_dtype)                       # (Bp, V)
    k_p = _pad_rows_cast(keys.reshape(B * N, V), Bp * N, param_dtype)     # (Bp*N, V)
    v_p = _pad_rows_cast(values.reshape(B * N, V), Bp * N, param_dtype)   # (Bp*N, V)
    w_p = jnp.pad(w_a.astype(param_dtype), ((0, 0), (0, Ep - E)))         # (V, Ep) bf16
    b_p = jnp.pad(b_a.astype(jnp.float32), (0, Ep - E)).reshape(1, Ep)    # (1, Ep) f32

    def build(use_pipeline_modes: bool):
        def _pm(count):
            if use_pipeline_modes and count is not None:
                return {"pipeline_mode": pl.Buffered(count)}
            return {}

        grid_spec = pltpu.PrefetchScalarGridSpec(
            num_scalar_prefetch=0,
            grid=(Bp // tb,),
            in_specs=[
                pl.BlockSpec((tb, V), lambda b: (b, 0)),                       # question tile
                pl.BlockSpec((tb * N, V), lambda b: (b, 0), **_pm(kv_buffers)),  # keys tile
                pl.BlockSpec((tb * N, V), lambda b: (b, 0), **_pm(kv_buffers)),  # values tile
                pl.BlockSpec((V, Ep), lambda b: (0, 0), **_pm(1)),             # A weight (resident)
                pl.BlockSpec((1, Ep), lambda b: (0, 0), **_pm(1)),             # A bias (resident)
            ],
            out_specs=pl.BlockSpec((tb, Ep), lambda b: (b, 0)),                # lane-dense store
        )
        return pl.pallas_call(
            kv_memnet_kernel,
            out_shape=jax.ShapeDtypeStruct((Bp, Ep), question.dtype),
            grid_spec=grid_spec,
            compiler_params=pltpu.CompilerParams(
                dimension_semantics=("parallel",),
                vmem_limit_bytes=vmem_limit,
            ),
        )

    try:
        out_p = build(True)(q_p, k_p, v_p, w_p, b_p)
    except Exception:
        # TODO(synk): some JAX versions reject single-buffered (pl.Buffered(1)) blocks;
        # fall back to default double buffering of the resident W / bias.
        out_p = build(False)(q_p, k_p, v_p, w_p, b_p)

    return out_p[:B, :E]


def reference(question, keys, values, w_a, b_a):
    q_emb = question @ w_a + b_a                       # (B, E)
    k_emb = keys @ w_a + b_a                           # (B, N, E)
    v_emb = values @ w_a + b_a                         # (B, N, E)
    scores = jnp.einsum("be,bne->bn", q_emb, k_emb)    # (B, N)
    attn = jax.nn.softmax(scores, axis=-1)
    return jnp.einsum("bn,bne->be", attn, v_emb)       # (B, E)


if __name__ == "__main__":
    batch, num_keys, vocab_size, embed_dim = 2, 8, 32, 16

    key = jax.random.PRNGKey(0)
    k_q, k_k, k_v, k_w, k_b = jax.random.split(key, 5)

    question = jax.random.normal(k_q, (batch, vocab_size), dtype=jnp.float32)
    keys = jax.random.normal(k_k, (batch, num_keys, vocab_size), dtype=jnp.float32)
    values = jax.random.normal(k_v, (batch, num_keys, vocab_size), dtype=jnp.float32)

    # nn.Linear-style init: U(-1/sqrt(V), 1/sqrt(V)).
    bound = 1.0 / (vocab_size ** 0.5)
    w_a = jax.random.uniform(k_w, (vocab_size, embed_dim), jnp.float32, -bound, bound)
    b_a = jax.random.uniform(k_b, (embed_dim,), jnp.float32, -bound, bound)
    # TODO(synk): the module's B embedding layer is unused in forward(); omitted.

    out = jax.block_until_ready(kv_memory_network(question, keys, values, w_a, b_a))
    ref = reference(question, keys, values, w_a, b_a)

    assert out.shape == (batch, embed_dim), out.shape
    # bf16 parameters/MXU operands + approx reciprocal -> bf16-level tolerance.
    assert jnp.allclose(out, ref, atol=5e-2, rtol=5e-2), (
        f"mismatch vs reference, max abs err = {jnp.max(jnp.abs(out - ref))}")

    print("KERNEL_OK")
</pallas_src>

<mosaic_0001>
module attributes {stable_mosaic.version = 11 : i64} {
  func.func @kv_memnet_kernel(%arg0: i32, %arg1: memref<16x32xbf16, #tpu.memory_space<vmem>>, %arg2: memref<128x32xbf16, #tpu.memory_space<vmem>>, %arg3: memref<128x32xbf16, #tpu.memory_space<vmem>>, %arg4: memref<32x128xbf16, #tpu.memory_space<vmem>>, %arg5: memref<1x128xf32, #tpu.memory_space<vmem>>, %arg6: memref<16x128xf32, #tpu.memory_space<vmem>>) attributes {dimension_semantics = [#tpu.dimension_semantics<parallel>], iteration_bounds = array<i64: 1>, scalar_prefetch = 0 : i64, scratch_operands = 0 : i64, tpu.core_type = #tpu.core_type<tc>, window_params = [{transform_indices = @transform_0, window_bounds = array<i64: 16, 32>}, {transform_indices = @transform_1, window_bounds = array<i64: 128, 32>}, {transform_indices = @transform_2, window_bounds = array<i64: 128, 32>}, {pipeline_mode = #tpu.pipeline_mode<synchronous>, transform_indices = @transform_3, window_bounds = array<i64: 32, 128>}, {pipeline_mode = #tpu.pipeline_mode<synchronous>, transform_indices = @transform_4, window_bounds = array<i64: 1, 128>}, {transform_indices = @transform_5, window_bounds = array<i64: 16, 128>}]} {
    %c0 = arith.constant 0 : index
    %c0_0 = arith.constant 0 : index
    %0 = vector.load %arg4[%c0, %c0_0] : memref<32x128xbf16, #tpu.memory_space<vmem>>, vector<32x128xbf16>
    %c0_1 = arith.constant 0 : index
    %c0_2 = arith.constant 0 : index
    %1 = vector.load %arg5[%c0_1, %c0_2] : memref<1x128xf32, #tpu.memory_space<vmem>>, vector<1x128xf32>
    %c0_3 = arith.constant 0 : index
    %c0_4 = arith.constant 0 : index
    %2 = vector.load %arg2[%c0_3, %c0_4] : memref<128x32xbf16, #tpu.memory_space<vmem>>, vector<128x32xbf16>
    %c0_5 = arith.constant 0 : index
    %c0_6 = arith.constant 0 : index
    %3 = vector.load %arg1[%c0_5, %c0_6] : memref<16x32xbf16, #tpu.memory_space<vmem>>, vector<16x32xbf16>
    %4 = tpu.concatenate %2, %3 in 0 : vector<128x32xbf16>, vector<16x32xbf16> -> vector<144x32xbf16>
    %cst = arith.constant dense<0.000000e+00> : vector<144x128xf32>
    %5 = tpu.matmul %4, %0, %cst {dimension_numbers = #tpu.dot_dimension_numbers<[1], [0], [0], [1], [0, 0, 1, 1], [], []>} : vector<144x32xbf16>, vector<32x128xbf16>, vector<144x128xf32> -> vector<144x128xf32>
    %6 = vector.broadcast %1 : vector<1x128xf32> to vector<144x128xf32>
    %7 = arith.addf %5, %6 : vector<144x128xf32>
    %8 = vector.extract_strided_slice %7 {offsets = [0, 0], sizes = [128, 128], strides = [1, 1]} : vector<144x128xf32> to vector<128x128xf32>
    %9 = vector.shape_cast %8 : vector<128x128xf32> to vector<16x8x128xf32>
    %10 = vector.extract_strided_slice %7 {offsets = [128, 0], sizes = [16, 128], strides = [1, 1]} : vector<144x128xf32> to vector<16x128xf32>
    %11 = vector.shape_cast %10 : vector<16x128xf32> to vector<16x1x128xf32>
    %12 = vector.broadcast %11 : vector<16x1x128xf32> to vector<16x8x128xf32>
    %13 = arith.mulf %12, %9 : vector<16x8x128xf32>
    %cst_7 = arith.constant dense<0.000000e+00> : vector<16x8xf32>
    %14 = vector.multi_reduction <add>, %13, %cst_7 [2] : vector<16x8x128xf32> to vector<16x8xf32>
    %cst_8 = arith.constant dense<0xFF800000> : vector<16xf32>
    %15 = vector.multi_reduction <maximumf>, %14, %cst_8 [1] : vector<16x8xf32> to vector<16xf32>
    %16 = vector.shape_cast %15 : vector<16xf32> to vector<16x1xf32>
    %17 = vector.broadcast %16 : vector<16x1xf32> to vector<16x8xf32>
    %18 = arith.subf %14, %17 : vector<16x8xf32>
    %19 = math.exp %18 : vector<16x8xf32>
    %cst_9 = arith.constant dense<0.000000e+00> : vector<16xf32>
    %20 = vector.multi_reduction <add>, %19, %cst_9 [1] : vector<16x8xf32> to vector<16xf32>
    %21 = vector.shape_cast %20 : vector<16xf32> to vector<16x1xf32>
    %22 = tpu.reciprocal %21 {approx = true} : vector<16x1xf32> -> vector<16x1xf32>
    %23 = vector.broadcast %22 : vector<16x1xf32> to vector<16x8xf32>
    %24 = arith.mulf %19, %23 : vector<16x8xf32>
    %c0_10 = arith.constant 0 : index
    %c0_11 = arith.constant 0 : index
    %25 = vector.load %arg3[%c0_10, %c0_11] : memref<128x32xbf16, #tpu.memory_space<vmem>>, vector<128x32xbf16>
    %26 = arith.extf %25 : vector<128x32xbf16> to vector<128x32xf32>
    %27 = vector.shape_cast %26 : vector<128x32xf32> to vector<16x8x32xf32>
    %28 = vector.shape_cast %24 : vector<16x8xf32> to vector<16x8x1xf32>
    %29 = vector.broadcast %28 : vector<16x8x1xf32> to vector<16x8x32xf32>
    %30 = arith.mulf %29, %27 : vector<16x8x32xf32>
    %cst_12 = arith.constant dense<0.000000e+00> : vector<16x32xf32>
    %31 = vector.multi_reduction <add>, %30, %cst_12 [1] : vector<16x8x32xf32> to vector<16x32xf32>
    %32 = arith.truncf %31 : vector<16x32xf32> to vector<16x32xbf16>
    %cst_13 = arith.constant dense<0.000000e+00> : vector<16x128xf32>
    %33 = tpu.matmul %32, %0, %cst_13 {dimension_numbers = #tpu.dot_dimension_numbers<[1], [0], [0], [1], [0, 0, 1, 1], [], []>} : vector<16x32xbf16>, vector<32x128xbf16>, vector<16x128xf32> -> vector<16x128xf32>
    %34 = vector.broadcast %1 : vector<1x128xf32> to vector<16x128xf32>
    %35 = arith.addf %33, %34 : vector<16x128xf32>
    %c0_14 = arith.constant 0 : index
    %c0_15 = arith.constant 0 : index
    %36 = vector.load %arg6[%c0_14, %c0_15] : memref<16x128xf32, #tpu.memory_space<vmem>>, vector<16x128xf32>
    tpu.vector_store %arg6[%c0_14, %c0_15], %35 {strides = array<i32>} : memref<16x128xf32, #tpu.memory_space<vmem>>, vector<16x128xf32>,
    return
  }
  func.func @transform_0(%arg0: i32) -> (i32, i32) {
    %c0_i32 = arith.constant 0 : i32
    %c0_i32_0 = arith.constant 0 : i32
    return %arg0, %c0_i32 : i32, i32
  }
  func.func @transform_1(%arg0: i32) -> (i32, i32) {
    %c0_i32 = arith.constant 0 : i32
    %c0_i32_0 = arith.constant 0 : i32
    return %arg0, %c0_i32 : i32, i32
  }
  func.func @transform_2(%arg0: i32) -> (i32, i32) {
    %c0_i32 = arith.constant 0 : i32
    %c0_i32_0 = arith.constant 0 : i32
    return %arg0, %c0_i32 : i32, i32
  }
  func.func @transform_3(%arg0: i32) -> (i32, i32) {
    %c0_i32 = arith.constant 0 : i32
    %c0_i32_0 = arith.constant 0 : i32
    %c0_i32_1 = arith.constant 0 : i32
    return %c0_i32, %c0_i32_0 : i32, i32
  }
  func.func @transform_4(%arg0: i32) -> (i32, i32) {
    %c0_i32 = arith.constant 0 : i32
    %c0_i32_0 = arith.constant 0 : i32
    %c0_i32_1 = arith.constant 0 : i32
    return %c0_i32, %c0_i32_0 : i32, i32
  }
  func.func @transform_5(%arg0: i32) -> (i32, i32) {
    %c0_i32 = arith.constant 0 : i32
    %c0_i32_0 = arith.constant 0 : i32
    return %arg0, %c0_i32 : i32, i32
  }
}

module attributes {stable_mosaic.version = 11 : i64} {
  func.func @kv_memnet_kernel(%arg0: i32, %arg1: memref<16x32xbf16, #tpu.memory_space<vmem>>, %arg2: memref<128x32xbf16, #tpu.memory_space<vmem>>, %arg3: memref<128x32xbf16, #tpu.memory_space<vmem>>, %arg4: memref<32x128xbf16, #tpu.memory_space<vmem>>, %arg5: memref<1x128xf32, #tpu.memory_space<vmem>>, %arg6: memref<16x128xf32, #tpu.memory_space<vmem>>) attributes {dimension_semantics = [#tpu.dimension_semantics<parallel>], iteration_bounds = array<i64: 1>, scalar_prefetch = 0 : i64, scratch_operands = 0 : i64, tpu.core_type = #tpu.core_type<tc>, window_params = [{transform_indices = @transform_0, window_bounds = array<i64: 16, 32>}, {transform_indices = @transform_1, window_bounds = array<i64: 128, 32>}, {transform_indices = @transform_2, window_bounds = array<i64: 128, 32>}, {pipeline_mode = #tpu.pipeline_mode<synchronous>, transform_indices = @transform_3, window_bounds = array<i64: 32, 128>}, {pipeline_mode = #tpu.pipeline_mode<synchronous>, transform_indices = @transform_4, window_bounds = array<i64: 1, 128>}, {transform_indices = @transform_5, window_bounds = array<i64: 16, 128>}]} {
    %c0 = arith.constant 0 : index
    %c0_0 = arith.constant 0 : index
    %0 = vector.load %arg4[%c0, %c0_0] : memref<32x128xbf16, #tpu.memory_space<vmem>>, vector<32x128xbf16>
    %c0_1 = arith.constant 0 : index
    %c0_2 = arith.constant 0 : index
    %1 = vector.load %arg5[%c0_1, %c0_2] : memref<1x128xf32, #tpu.memory_space<vmem>>, vector<1x128xf32>
    %c0_3 = arith.constant 0 : index
    %c0_4 = arith.constant 0 : index
    %2 = vector.load %arg2[%c0_3, %c0_4] : memref<128x32xbf16, #tpu.memory_space<vmem>>, vector<128x32xbf16>
    %c0_5 = arith.constant 0 : index
    %c0_6 = arith.constant 0 : index
    %3 = vector.load %arg1[%c0_5, %c0_6] : memref<16x32xbf16, #tpu.memory_space<vmem>>, vector<16x32xbf16>
    %4 = tpu.concatenate %2, %3 in 0 : vector<128x32xbf16>, vector<16x32xbf16> -> vector<144x32xbf16>
    %cst = arith.constant dense<0.000000e+00> : vector<144x128xf32>
    %5 = tpu.matmul %4, %0, %cst {dimension_numbers = #tpu.dot_dimension_numbers<[1], [0], [0], [1], [0, 0, 1, 1], [], []>} : vector<144x32xbf16>, vector<32x128xbf16>, vector<144x128xf32> -> vector<144x128xf32>
    %6 = vector.broadcast %1 : vector<1x128xf32> to vector<144x128xf32>
    %7 = arith.addf %5, %6 : vector<144x128xf32>
    %8 = vector.extract_strided_slice %7 {offsets = [0, 0], sizes = [128, 128], strides = [1, 1]} : vector<144x128xf32> to vector<128x128xf32>
    %9 = vector.shape_cast %8 : vector<128x128xf32> to vector<16x8x128xf32>
    %10 = vector.extract_strided_slice %7 {offsets = [128, 0], sizes = [16, 128], strides = [1, 1]} : vector<144x128xf32> to vector<16x128xf32>
    %11 = vector.shape_cast %10 : vector<16x128xf32> to vector<16x1x128xf32>
    %12 = vector.broadcast %11 : vector<16x1x128xf32> to vector<16x8x128xf32>
    %13 = arith.mulf %12, %9 : vector<16x8x128xf32>
    %cst_7 = arith.constant dense<0.000000e+00> : vector<16x8xf32>
    %14 = vector.multi_reduction <add>, %13, %cst_7 [2] : vector<16x8x128xf32> to vector<16x8xf32>
    %cst_8 = arith.constant dense<0xFF800000> : vector<16xf32>
    %15 = vector.multi_reduction <maximumf>, %14, %cst_8 [1] : vector<16x8xf32> to vector<16xf32>
    %16 = vector.shape_cast %15 : vector<16xf32> to vector<16x1xf32>
    %17 = vector.broadcast %16 : vector<16x1xf32> to vector<16x8xf32>
    %18 = arith.subf %14, %17 : vector<16x8xf32>
    %19 = math.exp %18 : vector<16x8xf32>
    %cst_9 = arith.constant dense<0.000000e+00> : vector<16xf32>
    %20 = vector.multi_reduction <add>, %19, %cst_9 [1] : vector<16x8xf32> to vector<16xf32>
    %21 = vector.shape_cast %20 : vector<16xf32> to vector<16x1xf32>
    %22 = tpu.reciprocal %21 {approx = true} : vector<16x1xf32> -> vector<16x1xf32>
    %23 = vector.broadcast %22 : vector<16x1xf32> to vector<16x8xf32>
    %24 = arith.mulf %19, %23 : vector<16x8xf32>
    %c0_10 = arith.constant 0 : index
    %c0_11 = arith.constant 0 : index
    %25 = vector.load %arg3[%c0_10, %c0_11] : memref<128x32xbf16, #tpu.memory_space<vmem>>, vector<128x32xbf16>
    %26 = arith.extf %25 : vector<128x32xbf16> to vector<128x32xf32>
    %27 = vector.shape_cast %26 : vector<128x32xf32> to vector<16x8x32xf32>
    %28 = vector.shape_cast %24 : vector<16x8xf32> to vector<16x8x1xf32>
    %29 = vector.broadcast %28 : vector<16x8x1xf32> to vector<16x8x32xf32>
    %30 = arith.mulf %29, %27 : vector<16x8x32xf32>
    %cst_12 = arith.constant dense<0.000000e+00> : vector<16x32xf32>
    %31 = vector.multi_reduction <add>, %30, %cst_12 [1] : vector<16x8x32xf32> to vector<16x32xf32>
    %32 = arith.truncf %31 : vector<16x32xf32> to vector<16x32xbf16>
    %cst_13 = arith.constant dense<0.000000e+00> : vector<16x128xf32>
    %33 = tpu.matmul %32, %0, %cst_13 {dimension_numbers = #tpu.dot_dimension_numbers<[1], [0], [0], [1], [0, 0, 1, 1], [], []>} : vector<16x32xbf16>, vector<32x128xbf16>, vector<16x128xf32> -> vector<16x128xf32>
    %34 = vector.broadcast %1 : vector<1x128xf32> to vector<16x128xf32>
    %35 = arith.addf %33, %34 : vector<16x128xf32>
    %c0_14 = arith.constant 0 : index
    %c0_15 = arith.constant 0 : index
    %36 = vector.load %arg6[%c0_14, %c0_15] : memref<16x128xf32, #tpu.memory_space<vmem>>, vector<16x128xf32>
    tpu.vector_store %arg6[%c0_14, %c0_15], %35 {strides = array<i32>} : memref<16x128xf32, #tpu.memory_space<vmem>>, vector<16x128xf32>,
    return
  }
  func.func @transform_0(%arg0: i32) -> (i32, i32) {
    %c0_i32 = arith.constant 0 : i32
    %c0_i32_0 = arith.constant 0 : i32
    return %arg0, %c0_i32 : i32, i32
  }
  func.func @transform_1(%arg0: i32) -> (i32, i32) {
    %c0_i32 = arith.constant 0 : i32
    %c0_i32_0 = arith.constant 0 : i32
    return %arg0, %c0_i32 : i32, i32
  }
  func.func @transform_2(%arg0: i32) -> (i32, i32) {
    %c0_i32 = arith.constant 0 : i32
    %c0_i32_0 = arith.constant 0 : i32
    return %arg0, %c0_i32 : i32, i32
  }
  func.func @transform_3(%arg0: i32) -> (i32, i32) {
    %c0_i32 = arith.constant 0 : i32
    %c0_i32_0 = arith.constant 0 : i32
    %c0_i32_1 = arith.constant 0 : i32
    return %c0_i32, %c0_i32_0 : i32, i32
  }
  func.func @transform_4(%arg0: i32) -> (i32, i32) {
    %c0_i32 = arith.constant 0 : i32
    %c0_i32_0 = arith.constant 0 : i32
    %c0_i32_1 = arith.constant 0 : i32
    return %c0_i32, %c0_i32_0 : i32, i32
  }
  func.func @transform_5(%arg0: i32) -> (i32, i32) {
    %c0_i32 = arith.constant 0 : i32
    %c0_i32_0 = arith.constant 0 : i32
    return %arg0, %c0_i32 : i32, i32
  }
}

</mosaic_0001>

<llo_original>
// kernel: tpu_custom_call.1
$region0: #{tpu_custom_call.1}
  #allocation0 [shape = 'u32[]', space=smem, size = 0x4, offset = 0x4, fixed_abs, tag = 'smem constant byte address 0x4 - core index']
  #allocation1 [shape = 'u32[72,128]{1,0:T(1,128)}', space=vmem, size = 0x9000, scoped, tag = 'internal scratch']
  %s0 = inlined_call_operand.vmem [shape: bf16[16,32], index: 0, kind: input, shape index: {}]
  %s1 = inlined_call_operand.vmem [shape: bf16[128,32], index: 1, kind: input, shape index: {}]
  %s2 = inlined_call_operand.vmem [shape: bf16[128,32], index: 2, kind: input, shape index: {}]
  %s3 = inlined_call_operand.vmem [shape: bf16[32,128], index: 3, kind: input, shape index: {}]
  %s4 = inlined_call_operand.vmem [shape: f32[1,128], index: 4, kind: input, shape index: {}]
  %s5 = inlined_call_operand.hbm [shape: f32[16,128], index: 5, kind: output, shape index: {}]
  %s6 = sld [smem:[#allocation0]]
  $region30: #{tpu_custom_call.1} parent=0
    _
  %s8 = ssub.s32 1, %s6
  %s9 = scalar_select 0, %s8, %s6
  $region1: #{tpu_custom_call.1} parent=0
    #allocation2 [shape = 'u8[8192]{0}', space=vmem, size = 0x2000, scoped, tag = 'output window, operand 0, single buffered']
    #allocation3 [shape = 's32[1]{0}', space=sflag, size = 0x4, scoped, tag = 'scoped memory for tpu_custom_call.1']
    %10 = vsyncpa [#allocation3], 0
    // Predicated region
    $region2: #{tpu_custom_call.1} parent=1 // pred_check
      _
    $region3: #{tpu_custom_call.1} parent=1 // pred_check_branch
      %12 = sbr.rel (0) target = $region5
    $region4: #{tpu_custom_call.1} parent=1 // pred_region
      _
    $region5: #{tpu_custom_call.1} parent=1 // pred_fallthru
      _
    // Predicated region
    $region6: #{tpu_custom_call.1} parent=1 // pred_check
      _
    $region7: #{tpu_custom_call.1} parent=1 // pred_check_branch
      %14 = sbr.rel (0) target = $region9
    $region8: #{tpu_custom_call.1} parent=1 // pred_region
      _
    $region9: #{tpu_custom_call.1} parent=1 // pred_fallthru
      _
    // Predicated region
    $region10: #{tpu_custom_call.1} parent=1 // pred_check
      _
    $region11: #{tpu_custom_call.1} parent=1 // pred_check_branch
      %16 = sbr.rel (0) target = $region13
    $region12: #{tpu_custom_call.1} parent=1 // pred_region
      _
    $region13: #{tpu_custom_call.1} parent=1 // pred_fallthru
      _
    // Predicated region
    $region14: #{tpu_custom_call.1} parent=1 // pred_check
      _
    $region15: #{tpu_custom_call.1} parent=1 // pred_check_branch
      %18 = sbr.rel (0) target = $region17
    $region16: #{tpu_custom_call.1} parent=1 // pred_region
      _
    $region17: #{tpu_custom_call.1} parent=1 // pred_fallthru
      _
    // Predicated region
    $region18: #{tpu_custom_call.1} parent=1 // pred_check
      _
    $region19: #{tpu_custom_call.1} parent=1 // pred_check_branch
      %20 = sbr.rel (0) target = $region21
    $region20: #{tpu_custom_call.1} parent=1 // pred_region
      _
    $region21: #{tpu_custom_call.1} parent=1 // pred_fallthru
      _
    %v22 = vld [vmem:[%s3] sm:$0xf]
    %v23 = vld [vmem:[%s3 + $0x4] sm:$0xf]
    %v24 = vld [vmem:[%s3 + $0x8] sm:$0xf]
    %v25 = vld [vmem:[%s3 + $0xc] sm:$0xf]
    %v26 = vld [vmem:[%s4] sm:$0x1]
    %v27 = vld [vmem:[%s1] sm:$0xf]
    %v28 = vld [vmem:[%s1 + $0x4] sm:$0xf]
    %v29 = vld [vmem:[%s1 + $0x8] sm:$0xf]
    %v30 = vld [vmem:[%s1 + $0xc] sm:$0xf]
    %v31 = vld [vmem:[%s1 + $0x10] sm:$0xf]
    %v32 = vld [vmem:[%s1 + $0x14] sm:$0xf]
    %v33 = vld [vmem:[%s1 + $0x18] sm:$0xf]
    %v34 = vld [vmem:[%s1 + $0x1c] sm:$0xf]
    %v35 = vld [vmem:[%s1 + $0x20] sm:$0xf]
    %v36 = vld [vmem:[%s1 + $0x24] sm:$0xf]
    %v37 = vld [vmem:[%s1 + $0x28] sm:$0xf]
    %v38 = vld [vmem:[%s1 + $0x2c] sm:$0xf]
    %v39 = vld [vmem:[%s1 + $0x30] sm:$0xf]
    %v40 = vld [vmem:[%s1 + $0x34] sm:$0xf]
    %v41 = vld [vmem:[%s1 + $0x38] sm:$0xf]
    %v42 = vld [vmem:[%s1 + $0x3c] sm:$0xf]
    %v43 = vld [vmem:[%s0] sm:$0xf]
    %v44 = vld [vmem:[%s0 + $0x4] sm:$0xf]
    %v61 = vunpack.c.l.b16 %v27
    %v62 = vunpack.c.l.b16 %v28
    %v63 = vunpack.c.l.b16 %v29
    %v64 = vunpack.c.l.b16 %v30
    %v65 = vunpack.c.l.b16 %v31
    %v66 = vunpack.c.l.b16 %v32
    %v67 = vunpack.c.l.b16 %v33
    %v68 = vunpack.c.l.b16 %v34
    %v69 = vunpack.c.l.b16 %v35
    %v70 = vunpack.c.l.b16 %v36
    %v71 = vunpack.c.l.b16 %v37
    %v72 = vunpack.c.l.b16 %v38
    %v73 = vunpack.c.l.b16 %v39
    %v74 = vunpack.c.l.b16 %v40
    %v75 = vunpack.c.l.b16 %v41
    %v76 = vunpack.c.l.b16 %v42
    %v77 = vpack.c.b16 %v62, %v61
    %v78 = vpack.c.b16 %v64, %v63
    %v79 = vpack.c.b16 %v66, %v65
    %v80 = vpack.c.b16 %v68, %v67
    %v81 = vpack.c.b16 %v70, %v69
    %v82 = vpack.c.b16 %v72, %v71
    %v83 = vpack.c.b16 %v74, %v73
    %v84 = vpack.c.b16 %v76, %v75
    %v87 = vunpack.c.l.b16 %v43
    %v88 = vunpack.c.l.b16 %v44
    %v89 = vpack.c.b16 %v88, %v87
    %v91 = vperm.slane %v26, 0
    %v97 = vunpack.c.l.b16 %v22
    %v98 = vunpack.c.l.b16 %v23
    %v99 = vunpack.c.l.b16 %v24
    %v100 = vunpack.c.l.b16 %v25
    %v101 = vpack.c.b16 %v98, %v97
    %v102 = vpack.c.b16 %v100, %v99
    %vm105 = vcmask 261120
    %v107 = vsel %vm105, %v77, 0
    %v110 = vsel %vm105, %v78, 0
    %v113 = vsel %vm105, %v79, 0
    %v116 = vsel %vm105, %v80, 0
    %v119 = vsel %vm105, %v81, 0
    %v122 = vsel %vm105, %v82, 0
    %v125 = vsel %vm105, %v83, 0
    %v128 = vsel %vm105, %v84, 0
    %v131 = vsel %vm105, %v89, 0
    %133 = vmatpush.bf16.msra.mxu0 0
    %134 = vmatpush.bf16.msra.mxu0 0
    %135 = vmatpush.bf16.msra.mxu0 0
    %136 = vmatpush.bf16.msra.mxu0 0
    %137 = vmatpush.bf16.msra.mxu0 0
    %138 = vmatpush.bf16.msra.mxu0 0
    %139 = vmatpush.bf16.msra.mxu0 %v102
    %140 = vmatpush.bf16.msra.mxu0 %v101
    %141 = vmatmul.bf16.gmra.mxu0 %v107
    %v142 = vpop.f32.mrf.mxu0
    %v143 = vadd.f32 %v91, %v142
    %v144 = vpop.f32.mrf.mxu0
    %v145 = vadd.f32 %v91, %v144
    %146 = vmatmul.bf16.gmra.mxu0 %v110
    %v147 = vpop.f32.mrf.mxu0
    %v148 = vadd.f32 %v91, %v147
    %v149 = vpop.f32.mrf.mxu0
    %v150 = vadd.f32 %v91, %v149
    %151 = vmatmul.bf16.gmra.mxu0 %v113
    %v152 = vpop.f32.mrf.mxu0
    %v153 = vadd.f32 %v91, %v152
    %v154 = vpop.f32.mrf.mxu0
    %v155 = vadd.f32 %v91, %v154
    %156 = vmatmul.bf16.gmra.mxu0 %v116
    %v157 = vpop.f32.mrf.mxu0
    %v158 = vadd.f32 %v91, %v157
    %v159 = vpop.f32.mrf.mxu0
    %v160 = vadd.f32 %v91, %v159
    %161 = vmatmul.bf16.gmra.mxu0 %v119
    %v162 = vpop.f32.mrf.mxu0
    %v163 = vadd.f32 %v91, %v162
    %v164 = vpop.f32.mrf.mxu0
    %v165 = vadd.f32 %v91, %v164
    %166 = vmatmul.bf16.gmra.mxu0 %v122
    %v167 = vpop.f32.mrf.mxu0
    %v168 = vadd.f32 %v91, %v167
    %v169 = vpop.f32.mrf.mxu0
    %v170 = vadd.f32 %v91, %v169
    %171 = vmatmul.bf16.gmra.mxu0 %v125
    %v172 = vpop.f32.mrf.mxu0
    %v173 = vadd.f32 %v91, %v172
    %v174 = vpop.f32.mrf.mxu0
    %v175 = vadd.f32 %v91, %v174
    %176 = vmatmul.bf16.gmra.mxu0 %v128
    %v177 = vpop.f32.mrf.mxu0
    %v178 = vadd.f32 %v91, %v177
    %v179 = vpop.f32.mrf.mxu0
    %v180 = vadd.f32 %v91, %v179
    %181 = vmatmul.bf16.gmra.mxu0 %v131
    %v182 = vpop.f32.mrf.mxu0
    %v183 = vadd.f32 %v91, %v182
    %v184 = vpop.f32.mrf.mxu0
    %v185 = vadd.f32 %v91, %v184
    %186 = vdwg.mxu0
    %v189 = vrot.slane %v183, 1
    %v190 = vrot.slane %v183, 2
    %v191 = vrot.slane %v183, 3
    %v192 = vrot.slane %v183, 4
    %v193 = vrot.slane %v183, 5
    %v194 = vrot.slane %v183, 6
    %v195 = vrot.slane %v183, 7
    %v196 = vrot.slane %v185, 1
    %v197 = vrot.slane %v185, 2
    %v198 = vrot.slane %v185, 3
    %v199 = vrot.slane %v185, 4
    %v200 = vrot.slane %v185, 5
    %v201 = vrot.slane %v185, 6
    %v202 = vrot.slane %v185, 7
    %v203 = vperm.slane %v183, 0
    %v204 = vperm.slane %v189, 0
    %v205 = vperm.slane %v190, 0
    %v206 = vperm.slane %v191, 0
    %v207 = vperm.slane %v192, 0
    %v208 = vperm.slane %v193, 0
    %v209 = vperm.slane %v194, 0
    %v210 = vperm.slane %v195, 0
    %v211 = vperm.slane %v185, 0
    %v212 = vperm.slane %v196, 0
    %v213 = vperm.slane %v197, 0
    %v214 = vperm.slane %v198, 0
    %v215 = vperm.slane %v199, 0
    %v216 = vperm.slane %v200, 0
    %v217 = vperm.slane %v201, 0
    %v218 = vperm.slane %v202, 0
    %v235 = vmul.f32 %v203, %v143
    %v236 = vmul.f32 %v204, %v145
    %v237 = vmul.f32 %v205, %v148
    %v238 = vmul.f32 %v206, %v150
    %v239 = vmul.f32 %v207, %v153
    %v240 = vmul.f32 %v208, %v155
    %v241 = vmul.f32 %v209, %v158
    %v242 = vmul.f32 %v210, %v160
    %v243 = vmul.f32 %v211, %v163
    %v244 = vmul.f32 %v212, %v165
    %v245 = vmul.f32 %v213, %v168
    %v246 = vmul.f32 %v214, %v170
    %v247 = vmul.f32 %v215, %v173
    %v248 = vmul.f32 %v216, %v175
    %v249 = vmul.f32 %v217, %v178
    %v250 = vmul.f32 %v218, %v180
    %251 = vadd.xlane.f32.xlu0 %v235
    %v252 = vpop.xlane.xlu0 %251
    %253 = vadd.xlane.f32.xlu0 %v236
    %v254 = vpop.xlane.xlu0 %253
    %255 = vadd.xlane.f32.xlu0 %v237
    %v256 = vpop.xlane.xlu0 %255
    %257 = vadd.xlane.f32.xlu0 %v238
    %v258 = vpop.xlane.xlu0 %257
    %259 = vadd.xlane.f32.xlu0 %v239
    %v260 = vpop.xlane.xlu0 %259
    %261 = vadd.xlane.f32.xlu0 %v240
    %v262 = vpop.xlane.xlu0 %261
    %263 = vadd.xlane.f32.xlu0 %v241
    %v264 = vpop.xlane.xlu0 %263
    %265 = vadd.xlane.f32.xlu0 %v242
    %v266 = vpop.xlane.xlu0 %265
    %267 = vadd.xlane.f32.xlu0 %v243
    %v268 = vpop.xlane.xlu0 %267
    %269 = vadd.xlane.f32.xlu0 %v244
    %v270 = vpop.xlane.xlu0 %269
    %271 = vadd.xlane.f32.xlu0 %v245
    %v272 = vpop.xlane.xlu0 %271
    %273 = vadd.xlane.f32.xlu0 %v246
    %v274 = vpop.xlane.xlu0 %273
    %275 = vadd.xlane.f32.xlu0 %v247
    %v276 = vpop.xlane.xlu0 %275
    %277 = vadd.xlane.f32.xlu0 %v248
    %v278 = vpop.xlane.xlu0 %277
    %279 = vadd.xlane.f32.xlu0 %v249
    %v280 = vpop.xlane.xlu0 %279
    %281 = vadd.xlane.f32.xlu0 %v250
    %v282 = vpop.xlane.xlu0 %281
    %v299 = vlaneseq
    %v300 = vand.u32 %v299, 127
    %v301 = vperm.slane %v252, %v300
    %v302 = vperm.slane %v254, %v300
    %v303 = vperm.slane %v256, %v300
    %v304 = vperm.slane %v258, %v300
    %v305 = vperm.slane %v260, %v300
    %v306 = vperm.slane %v262, %v300
    %v307 = vperm.slane %v264, %v300
    %v308 = vperm.slane %v266, %v300
    %v309 = vperm.slane %v268, %v300
    %v310 = vperm.slane %v270, %v300
    %v311 = vperm.slane %v272, %v300
    %v312 = vperm.slane %v274, %v300
    %v313 = vperm.slane %v276, %v300
    %v314 = vperm.slane %v278, %v300
    %v315 = vperm.slane %v280, %v300
    %v316 = vperm.slane %v282, %v300
    %vm317 = vcmask 1041409
    %v318 = vsel %vm317, %v302, %v301
    %vm319 = vcmask 1042434
    %v320 = vsel %vm319, %v303, %v318
    %vm321 = vcmask 1043459
    %v322 = vsel %vm321, %v304, %v320
    %vm323 = vcmask 1044484
    %v324 = vsel %vm323, %v305, %v322
    %vm325 = vcmask 1045509
    %v326 = vsel %vm325, %v306, %v324
    %vm327 = vcmask 1046534
    %v328 = vsel %vm327, %v307, %v326
    %vm329 = vcmask 1047559
    %v330 = vsel %vm329, %v308, %v328
    %v331 = vsel %vm317, %v310, %v309
    %v332 = vsel %vm319, %v311, %v331
    %v333 = vsel %vm321, %v312, %v332
    %v334 = vsel %vm323, %v313, %v333
    %v335 = vsel %vm325, %v314, %v334
    %v336 = vsel %vm327, %v315, %v335
    %v337 = vsel %vm329, %v316, %v336
    %vm340 = vcmask 64512
    %v341 = vsel %vm340, %v330, -inf
    %342 = vmax.xlane.f32.xlu0 %v341
    %v343 = vpop.xlane.xlu0 %342
    %v344 = vsel %vm340, %v337, -inf
    %345 = vmax.xlane.f32.xlu0 %v344
    %v346 = vpop.xlane.xlu0 %345
    %v349 = vperm.slane %v343, 0
    %v350 = vperm.slane %v343, 1
    %v351 = vperm.slane %v343, 2
    %v352 = vperm.slane %v343, 3
    %v353 = vperm.slane %v343, 4
    %v354 = vperm.slane %v343, 5
    %v355 = vperm.slane %v343, 6
    %v356 = vperm.slane %v343, 7
    %v357 = vperm.slane %v346, 0
    %v358 = vperm.slane %v346, 1
    %v359 = vperm.slane %v346, 2
    %v360 = vperm.slane %v346, 3
    %v361 = vperm.slane %v346, 4
    %v362 = vperm.slane %v346, 5
    %v363 = vperm.slane %v346, 6
    %v364 = vperm.slane %v346, 7
    %v381 = vsub.f32 %v252, %v349
    %v382 = vsub.f32 %v254, %v350
    %v383 = vsub.f32 %v256, %v351
    %v384 = vsub.f32 %v258, %v352
    %v385 = vsub.f32 %v260, %v353
    %v386 = vsub.f32 %v262, %v354
    %v387 = vsub.f32 %v264, %v355
    %v388 = vsub.f32 %v266, %v356
    %v389 = vsub.f32 %v268, %v357
    %v390 = vsub.f32 %v270, %v358
    %v391 = vsub.f32 %v272, %v359
    %v392 = vsub.f32 %v274, %v360
    %v393 = vsub.f32 %v276, %v361
    %v394 = vsub.f32 %v278, %v362
    %v395 = vsub.f32 %v280, %v363
    %v396 = vsub.f32 %v282, %v364
    %v397 = vmul.f32 %v381, 1.442695
    %v398 = vpow.pop %v397
    %v399 = vmul.f32 %v382, 1.442695
    %v400 = vpow.pop %v399
    %v401 = vmul.f32 %v383, 1.442695
    %v402 = vpow.pop %v401
    %v403 = vmul.f32 %v384, 1.442695
    %v404 = vpow.pop %v403
    %v405 = vmul.f32 %v385, 1.442695
    %v406 = vpow.pop %v405
    %v407 = vmul.f32 %v386, 1.442695
    %v408 = vpow.pop %v407
    %v409 = vmul.f32 %v387, 1.442695
    %v410 = vpow.pop %v409
    %v411 = vmul.f32 %v388, 1.442695
    %v412 = vpow.pop %v411
    %v413 = vmul.f32 %v389, 1.442695
    %v414 = vpow.pop %v413
    %v415 = vmul.f32 %v390, 1.442695
    %v416 = vpow.pop %v415
    %v417 = vmul.f32 %v391, 1.442695
    %v418 = vpow.pop %v417
    %v419 = vmul.f32 %v392, 1.442695
    %v420 = vpow.pop %v419
    %v421 = vmul.f32 %v393, 1.442695
    %v422 = vpow.pop %v421
    %v423 = vmul.f32 %v394, 1.442695
    %v424 = vpow.pop %v423
    %v425 = vmul.f32 %v395, 1.442695
    %v426 = vpow.pop %v425
    %v427 = vmul.f32 %v396, 1.442695
    %v428 = vpow.pop %v427
    %445 = vset.pattern.permute.xlu0 0
    %446 = vperm.xlu0 %445, %v398
    %v447 = vpop.permute.xlu0 %446
    %448 = vset.pattern.permute.xlu0 0
    %449 = vperm.xlu0 %448, %v400
    %v450 = vpop.permute.xlu0 %449
    %451 = vset.pattern.permute.xlu0 0
    %452 = vperm.xlu0 %451, %v402
    %v453 = vpop.permute.xlu0 %452
    %454 = vset.pattern.permute.xlu0 0
    %455 = vperm.xlu0 %454, %v404
    %v456 = vpop.permute.xlu0 %455
    %457 = vset.pattern.permute.xlu0 0
    %458 = vperm.xlu0 %457, %v406
    %v459 = vpop.permute.xlu0 %458
    %460 = vset.pattern.permute.xlu0 0
    %461 = vperm.xlu0 %460, %v408
    %v462 = vpop.permute.xlu0 %461
    %463 = vset.pattern.permute.xlu0 0
    %464 = vperm.xlu0 %463, %v410
    %v465 = vpop.permute.xlu0 %464
    %466 = vset.pattern.permute.xlu0 0
    %467 = vperm.xlu0 %466, %v412
    %v468 = vpop.permute.xlu0 %467
    %469 = vset.pattern.permute.xlu0 0
    %470 = vperm.xlu0 %469, %v414
    %v471 = vpop.permute.xlu0 %470
    %472 = vset.pattern.permute.xlu0 0
    %473 = vperm.xlu0 %472, %v416
    %v474 = vpop.permute.xlu0 %473
    %475 = vset.pattern.permute.xlu0 0
    %476 = vperm.xlu0 %475, %v418
    %v477 = vpop.permute.xlu0 %476
    %478 = vset.pattern.permute.xlu0 0
    %479 = vperm.xlu0 %478, %v420
    %v480 = vpop.permute.xlu0 %479
    %481 = vset.pattern.permute.xlu0 0
    %482 = vperm.xlu0 %481, %v422
    %v483 = vpop.permute.xlu0 %482
    %484 = vset.pattern.permute.xlu0 0
    %485 = vperm.xlu0 %484, %v424
    %v486 = vpop.permute.xlu0 %485
    %487 = vset.pattern.permute.xlu0 0
    %488 = vperm.xlu0 %487, %v426
    %v489 = vpop.permute.xlu0 %488
    %490 = vset.pattern.permute.xlu0 0
    %491 = vperm.xlu0 %490, %v428
    %v492 = vpop.permute.xlu0 %491
    %v493 = vperm.slane %v447, %v300
    %v494 = vperm.slane %v450, %v300
    %v495 = vperm.slane %v453, %v300
    %v496 = vperm.slane %v456, %v300
    %v497 = vperm.slane %v459, %v300
    %v498 = vperm.slane %v462, %v300
    %v499 = vperm.slane %v465, %v300
    %v500 = vperm.slane %v468, %v300
    %v501 = vperm.slane %v471, %v300
    %v502 = vperm.slane %v474, %v300
    %v503 = vperm.slane %v477, %v300
    %v504 = vperm.slane %v480, %v300
    %v505 = vperm.slane %v483, %v300
    %v506 = vperm.slane %v486, %v300
    %v507 = vperm.slane %v489, %v300
    %v508 = vperm.slane %v492, %v300
    %v509 = vsel %vm317, %v494, %v493
    %v510 = vsel %vm319, %v495, %v509
    %v511 = vsel %vm321, %v496, %v510
    %v512 = vsel %vm323, %v497, %v511
    %v513 = vsel %vm325, %v498, %v512
    %v514 = vsel %vm327, %v499, %v513
    %v515 = vsel %vm329, %v500, %v514
    %v516 = vsel %vm317, %v502, %v501
    %v517 = vsel %vm319, %v503, %v516
    %v518 = vsel %vm321, %v504, %v517
    %v519 = vsel %vm323, %v505, %v518
    %v520 = vsel %vm325, %v506, %v519
    %v521 = vsel %vm327, %v507, %v520
    %v522 = vsel %vm329, %v508, %v521
    %v525 = vsel %vm340, %v515, 0.0
    %526 = vadd.xlane.f32.xlu0 %v525
    %v527 = vpop.xlane.xlu0 %526
    %v528 = vsel %vm340, %v522, 0.0
    %529 = vadd.xlane.f32.xlu0 %v528
    %v530 = vpop.xlane.xlu0 %529
    %v531 = vrcp.pop %v527
    %v532 = vrcp.pop %v530
    %v535 = vperm.slane %v531, 0
    %v536 = vperm.slane %v531, 1
    %v537 = vperm.slane %v531, 2
    %v538 = vperm.slane %v531, 3
    %v539 = vperm.slane %v531, 4
    %v540 = vperm.slane %v531, 5
    %v541 = vperm.slane %v531, 6
    %v542 = vperm.slane %v531, 7
    %v543 = vperm.slane %v532, 0
    %v544 = vperm.slane %v532, 1
    %v545 = vperm.slane %v532, 2
    %v546 = vperm.slane %v532, 3
    %v547 = vperm.slane %v532, 4
    %v548 = vperm.slane %v532, 5
    %v549 = vperm.slane %v532, 6
    %v550 = vperm.slane %v532, 7
    %v567 = vmul.f32 %v398, %v535
    %v568 = vmul.f32 %v400, %v536
    %v569 = vmul.f32 %v402, %v537
    %v570 = vmul.f32 %v404, %v538
    %v571 = vmul.f32 %v406, %v539
    %v572 = vmul.f32 %v408, %v540
    %v573 = vmul.f32 %v410, %v541
    %v574 = vmul.f32 %v412, %v542
    %v575 = vmul.f32 %v414, %v543
    %v576 = vmul.f32 %v416, %v544
    %v577 = vmul.f32 %v418, %v545
    %v578 = vmul.f32 %v420, %v546
    %v579 = vmul.f32 %v422, %v547
    %v580 = vmul.f32 %v424, %v548
    %v581 = vmul.f32 %v426, %v549
    %v582 = vmul.f32 %v428, %v550
    %v583 = vld [vmem:[%s2] sm:$0xf]
    %v584 = vld [vmem:[%s2 + $0x4] sm:$0xf]
    %v585 = vld [vmem:[%s2 + $0x8] sm:$0xf]
    %v586 = vld [vmem:[%s2 + $0xc] sm:$0xf]
    %v587 = vld [vmem:[%s2 + $0x10] sm:$0xf]
    %v588 = vld [vmem:[%s2 + $0x14] sm:$0xf]
    %v589 = vld [vmem:[%s2 + $0x18] sm:$0xf]
    %v590 = vld [vmem:[%s2 + $0x1c] sm:$0xf]
    %v591 = vld [vmem:[%s2 + $0x20] sm:$0xf]
    %v592 = vld [vmem:[%s2 + $0x24] sm:$0xf]
    %v593 = vld [vmem:[%s2 + $0x28] sm:$0xf]
    %v594 = vld [vmem:[%s2 + $0x2c] sm:$0xf]
    %v595 = vld [vmem:[%s2 + $0x30] sm:$0xf]
    %v596 = vld [vmem:[%s2 + $0x34] sm:$0xf]
    %v597 = vld [vmem:[%s2 + $0x38] sm:$0xf]
    %v598 = vld [vmem:[%s2 + $0x3c] sm:$0xf]
    %v599 = vunpack.c.l.bf16 %v583
    %v600 = vunpack.c.l.bf16 %v584
    %v601 = vunpack.c.l.bf16 %v585
    %v602 = vunpack.c.l.bf16 %v586
    %v603 = vunpack.c.l.bf16 %v587
    %v604 = vunpack.c.l.bf16 %v588
    %v605 = vunpack.c.l.bf16 %v589
    %v606 = vunpack.c.l.bf16 %v590
    %v607 = vunpack.c.l.bf16 %v591
    %v608 = vunpack.c.l.bf16 %v592
    %v609 = vunpack.c.l.bf16 %v593
    %v610 = vunpack.c.l.bf16 %v594
    %v611 = vunpack.c.l.bf16 %v595
    %v612 = vunpack.c.l.bf16 %v596
    %v613 = vunpack.c.l.bf16 %v597
    %v614 = vunpack.c.l.bf16 %v598
    %616 = vset.pattern.permute.xlu0 0
    %617 = vperm.xlu0 %616, %v567
    %v618 = vpop.permute.xlu0 %617
    %621 = vset.pattern.permute.xlu0 0
    %622 = vperm.xlu0 %621, %v568
    %v623 = vpop.permute.xlu0 %622
    %626 = vset.pattern.permute.xlu0 0
    %627 = vperm.xlu0 %626, %v569
    %v628 = vpop.permute.xlu0 %627
    %631 = vset.pattern.permute.xlu0 0
    %632 = vperm.xlu0 %631, %v570
    %v633 = vpop.permute.xlu0 %632
    %636 = vset.pattern.permute.xlu0 0
    %637 = vperm.xlu0 %636, %v571
    %v638 = vpop.permute.xlu0 %637
    %641 = vset.pattern.permute.xlu0 0
    %642 = vperm.xlu0 %641, %v572
    %v643 = vpop.permute.xlu0 %642
    %646 = vset.pattern.permute.xlu0 0
    %647 = vperm.xlu0 %646, %v573
    %v648 = vpop.permute.xlu0 %647
    %651 = vset.pattern.permute.xlu0 0
    %652 = vperm.xlu0 %651, %v574
    %v653 = vpop.permute.xlu0 %652
    %656 = vset.pattern.permute.xlu0 0
    %657 = vperm.xlu0 %656, %v575
    %v658 = vpop.permute.xlu0 %657
    %661 = vset.pattern.permute.xlu0 0
    %662 = vperm.xlu0 %661, %v576
    %v663 = vpop.permute.xlu0 %662
    %666 = vset.pattern.permute.xlu0 0
    %667 = vperm.xlu0 %666, %v577
    %v668 = vpop.permute.xlu0 %667
    %671 = vset.pattern.permute.xlu0 0
    %672 = vperm.xlu0 %671, %v578
    %v673 = vpop.permute.xlu0 %672
    %676 = vset.pattern.permute.xlu0 0
    %677 = vperm.xlu0 %676, %v579
    %v678 = vpop.permute.xlu0 %677
    %681 = vset.pattern.permute.xlu0 0
    %682 = vperm.xlu0 %681, %v580
    %v683 = vpop.permute.xlu0 %682
    %686 = vset.pattern.permute.xlu0 0
    %687 = vperm.xlu0 %686, %v581
    %v688 = vpop.permute.xlu0 %687
    %691 = vset.pattern.permute.xlu0 0
    %692 = vperm.xlu0 %691, %v582
    %v693 = vpop.permute.xlu0 %692
    %v695 = vmul.f32 %v618, %v599
    %v696 = vmul.f32 %v623, %v600
    %v697 = vmul.f32 %v628, %v601
    %v698 = vmul.f32 %v633, %v602
    %v699 = vmul.f32 %v638, %v603
    %v700 = vmul.f32 %v643, %v604
    %v701 = vmul.f32 %v648, %v605
    %v702 = vmul.f32 %v653, %v606
    %v703 = vmul.f32 %v658, %v607
    %v704 = vmul.f32 %v663, %v608
    %v705 = vmul.f32 %v668, %v609
    %v706 = vmul.f32 %v673, %v610
    %v707 = vmul.f32 %v678, %v611
    %v708 = vmul.f32 %v683, %v612
    %v709 = vmul.f32 %v688, %v613
    %v710 = vmul.f32 %v693, %v614
    %v711 = vsel %vm105, %v695, 0.0
    %v712 = vrot.slane %v711, 4
    %v713 = vadd.f32 %v711, %v712
    %v714 = vrot.slane %v713, 2
    %v715 = vadd.f32 %v713, %v714
    %v716 = vrot.slane %v715, 1
    %v717 = vadd.f32 %v715, %v716
    %v718 = vsel %vm105, %v696, 0.0
    %v719 = vrot.slane %v718, 4
    %v720 = vadd.f32 %v718, %v719
    %v721 = vrot.slane %v720, 2
    %v722 = vadd.f32 %v720, %v721
    %v723 = vrot.slane %v722, 1
    %v724 = vadd.f32 %v722, %v723
    %v725 = vsel %vm105, %v697, 0.0
    %v726 = vrot.slane %v725, 4
    %v727 = vadd.f32 %v725, %v726
    %v728 = vrot.slane %v727, 2
    %v729 = vadd.f32 %v727, %v728
    %v730 = vrot.slane %v729, 1
    %v731 = vadd.f32 %v729, %v730
    %v732 = vsel %vm105, %v698, 0.0
    %v733 = vrot.slane %v732, 4
    %v734 = vadd.f32 %v732, %v733
    %v735 = vrot.slane %v734, 2
    %v736 = vadd.f32 %v734, %v735
    %v737 = vrot.slane %v736, 1
    %v738 = vadd.f32 %v736, %v737
    %v739 = vsel %vm105, %v699, 0.0
    %v740 = vrot.slane %v739, 4
    %v741 = vadd.f32 %v739, %v740
    %v742 = vrot.slane %v741, 2
    %v743 = vadd.f32 %v741, %v742
    %v744 = vrot.slane %v743, 1
    %v745 = vadd.f32 %v743, %v744
    %v746 = vsel %vm105, %v700, 0.0
    %v747 = vrot.slane %v746, 4
    %v748 = vadd.f32 %v746, %v747
    %v749 = vrot.slane %v748, 2
    %v750 = vadd.f32 %v748, %v749
    %v751 = vrot.slane %v750, 1
    %v752 = vadd.f32 %v750, %v751
    %v753 = vsel %vm105, %v701, 0.0
    %v754 = vrot.slane %v753, 4
    %v755 = vadd.f32 %v753, %v754
    %v756 = vrot.slane %v755, 2
    %v757 = vadd.f32 %v755, %v756
    %v758 = vrot.slane %v757, 1
    %v759 = vadd.f32 %v757, %v758
    %v760 = vsel %vm105, %v702, 0.0
    %v761 = vrot.slane %v760, 4
    %v762 = vadd.f32 %v760, %v761
    %v763 = vrot.slane %v762, 2
    %v764 = vadd.f32 %v762, %v763
    %v765 = vrot.slane %v764, 1
    %v766 = vadd.f32 %v764, %v765
    %v767 = vsel %vm105, %v703, 0.0
    %v768 = vrot.slane %v767, 4
    %v769 = vadd.f32 %v767, %v768
    %v770 = vrot.slane %v769, 2
    %v771 = vadd.f32 %v769, %v770
    %v772 = vrot.slane %v771, 1
    %v773 = vadd.f32 %v771, %v772
    %v774 = vsel %vm105, %v704, 0.0
    %v775 = vrot.slane %v774, 4
    %v776 = vadd.f32 %v774, %v775
    %v777 = vrot.slane %v776, 2
    %v778 = vadd.f32 %v776, %v777
    %v779 = vrot.slane %v778, 1
    %v780 = vadd.f32 %v778, %v779
    %v781 = vsel %vm105, %v705, 0.0
    %v782 = vrot.slane %v781, 4
    %v783 = vadd.f32 %v781, %v782
    %v784 = vrot.slane %v783, 2
    %v785 = vadd.f32 %v783, %v784
    %v786 = vrot.slane %v785, 1
    %v787 = vadd.f32 %v785, %v786
    %v788 = vsel %vm105, %v706, 0.0
    %v789 = vrot.slane %v788, 4
    %v790 = vadd.f32 %v788, %v789
    %v791 = vrot.slane %v790, 2
    %v792 = vadd.f32 %v790, %v791
    %v793 = vrot.slane %v792, 1
    %v794 = vadd.f32 %v792, %v793
    %v795 = vsel %vm105, %v707, 0.0
    %v796 = vrot.slane %v795, 4
    %v797 = vadd.f32 %v795, %v796
    %v798 = vrot.slane %v797, 2
    %v799 = vadd.f32 %v797, %v798
    %v800 = vrot.slane %v799, 1
    %v801 = vadd.f32 %v799, %v800
    %v802 = vsel %vm105, %v708, 0.0
    %v803 = vrot.slane %v802, 4
    %v804 = vadd.f32 %v802, %v803
    %v805 = vrot.slane %v804, 2
    %v806 = vadd.f32 %v804, %v805
    %v807 = vrot.slane %v806, 1
    %v808 = vadd.f32 %v806, %v807
    %v809 = vsel %vm105, %v709, 0.0
    %v810 = vrot.slane %v809, 4
    %v811 = vadd.f32 %v809, %v810
    %v812 = vrot.slane %v811, 2
    %v813 = vadd.f32 %v811, %v812
    %v814 = vrot.slane %v813, 1
    %v815 = vadd.f32 %v813, %v814
    %v816 = vsel %vm105, %v710, 0.0
    %v817 = vrot.slane %v816, 4
    %v818 = vadd.f32 %v816, %v817
    %v819 = vrot.slane %v818, 2
    %v820 = vadd.f32 %v818, %v819
    %v821 = vrot.slane %v820, 1
    %v822 = vadd.f32 %v820, %v821
    %v823 = vpack.c.bf16 %v717, %v717
    %v824 = vpack.c.bf16 %v724, %v724
    %v825 = vpack.c.bf16 %v731, %v731
    %v826 = vpack.c.bf16 %v738, %v738
    %v827 = vpack.c.bf16 %v745, %v745
    %v828 = vpack.c.bf16 %v752, %v752
    %v829 = vpack.c.bf16 %v759, %v759
    %v830 = vpack.c.bf16 %v766, %v766
    %v831 = vpack.c.bf16 %v773, %v773
    %v832 = vpack.c.bf16 %v780, %v780
    %v833 = vpack.c.bf16 %v787, %v787
    %v834 = vpack.c.bf16 %v794, %v794
    %v835 = vpack.c.bf16 %v801, %v801
    %v836 = vpack.c.bf16 %v808, %v808
    %v837 = vpack.c.bf16 %v815, %v815
    %v838 = vpack.c.bf16 %v822, %v822
    %v855 = vunpack.c.l.b16 %v823
    %v856 = vunpack.c.l.b16 %v824
    %v857 = vunpack.c.l.b16 %v825
    %v858 = vunpack.c.l.b16 %v826
    %v859 = vunpack.c.l.b16 %v827
    %v860 = vunpack.c.l.b16 %v828
    %v861 = vunpack.c.l.b16 %v829
    %v862 = vunpack.c.l.b16 %v830
    %v863 = vunpack.c.l.b16 %v831
    %v864 = vunpack.c.l.b16 %v832
    %v865 = vunpack.c.l.b16 %v833
    %v866 = vunpack.c.l.b16 %v834
    %v867 = vunpack.c.l.b16 %v835
    %v868 = vunpack.c.l.b16 %v836
    %v869 = vunpack.c.l.b16 %v837
    %v870 = vunpack.c.l.b16 %v838
    %v871 = vsel %vm317, %v856, %v855
    %v872 = vsel %vm319, %v857, %v871
    %v873 = vsel %vm321, %v858, %v872
    %v874 = vsel %vm323, %v859, %v873
    %v875 = vsel %vm325, %v860, %v874
    %v876 = vsel %vm327, %v861, %v875
    %v877 = vsel %vm329, %v862, %v876
    %v878 = vsel %vm317, %v864, %v863
    %v879 = vsel %vm319, %v865, %v878
    %v880 = vsel %vm321, %v866, %v879
    %v881 = vsel %vm323, %v867, %v880
    %v882 = vsel %vm325, %v868, %v881
    %v883 = vsel %vm327, %v869, %v882
    %v884 = vsel %vm329, %v870, %v883
    %v885 = vpack.c.b16 %v884, %v877
    %v887 = vsel %vm105, %v885, 0
    %889 = vmatpush.bf16.msra.mxu0 0
    %890 = vmatpush.bf16.msra.mxu0 0
    %891 = vmatpush.bf16.msra.mxu0 0
    %892 = vmatpush.bf16.msra.mxu0 0
    %893 = vmatpush.bf16.msra.mxu0 0
    %894 = vmatpush.bf16.msra.mxu0 0
    %895 = vmatpush.bf16.msra.mxu0 %v102
    %896 = vmatpush.bf16.msra.mxu0 %v101
    %897 = vmatmul.bf16.gmra.mxu0 %v887
    %v898 = vpop.f32.mrf.mxu0
    %v899 = vadd.f32 %v91, %v898
    %v900 = vpop.f32.mrf.mxu0
    %v901 = vadd.f32 %v91, %v900
    %902 = vdwg.mxu0
    %903 = vst [vmem:[#allocation2] sm:$0xff] %v899
    %904 = vst [vmem:[#allocation2 + $0x8] sm:$0xff] %v901
    // Predicated region
    $region22: #{tpu_custom_call.1} parent=1 // pred_check
      _
    $region23: #{tpu_custom_call.1} parent=1 // pred_check_branch
      %906 = sbr.rel (0) target = $region25
    $region24: #{tpu_custom_call.1} parent=1 // pred_region
      %908 = vsyncadd [#allocation3], 0
      %s909 = sshll.u32 [#allocation2], 4
      %s910 = int_to_ptr.vmem [resolvable:$true] %s909
      %s911 = sshll.u32 %s5, 4
      %s912 = int_to_ptr.hbm [resolvable:$true] %s911
      %917 = dma.vmem_to_hbm [thread:$0]  %s910, 256, %s912, [#allocation3], 128, 128, 8
    $region25: #{tpu_custom_call.1} parent=1 // pred_fallthru
      _
    // Predicated region
    $region26: #{tpu_custom_call.1} parent=1 // pred_check
      _
    $region27: #{tpu_custom_call.1} parent=1 // pred_check_branch
      %919 = sbr.rel (0) target = $region29
    $region28: #{tpu_custom_call.1} parent=1 // pred_region
      %921 = dma.done [#allocation3], 256
    $region29: #{tpu_custom_call.1} parent=1 // pred_fallthru
      _
    %922 = vsyncpa [#allocation3], 1

// kernel: tpu_custom_call.1
$region0: #{tpu_custom_call.1}
  #allocation0 [shape = 'u32[]', space=smem, size = 0x4, offset = 0x4, fixed_abs, tag = 'smem constant byte address 0x4 - core index']
  #allocation1 [shape = 'u32[72,128]{1,0:T(1,128)}', space=vmem, size = 0x9000, scoped, tag = 'internal scratch']
  %s0 = inlined_call_operand.vmem [shape: bf16[16,32], index: 0, kind: input, shape index: {}]
  %s1 = inlined_call_operand.vmem [shape: bf16[128,32], index: 1, kind: input, shape index: {}]
  %s2 = inlined_call_operand.vmem [shape: bf16[128,32], index: 2, kind: input, shape index: {}]
  %s3 = inlined_call_operand.vmem [shape: bf16[32,128], index: 3, kind: input, shape index: {}]
  %s4 = inlined_call_operand.vmem [shape: f32[1,128], index: 4, kind: input, shape index: {}]
  %s5 = inlined_call_operand.hbm [shape: f32[16,128], index: 5, kind: output, shape index: {}]
  %s6 = sld [smem:[#allocation0]]
  $region30: #{tpu_custom_call.1} parent=0
    _
  %s8 = ssub.s32 1, %s6
  %s9 = scalar_select 0, %s8, %s6
  $region1: #{tpu_custom_call.1} parent=0
    #allocation2 [shape = 'u8[8192]{0}', space=vmem, size = 0x2000, scoped, tag = 'output window, operand 0, single buffered']
    #allocation3 [shape = 's32[1]{0}', space=sflag, size = 0x4, scoped, tag = 'scoped memory for tpu_custom_call.1']
    %10 = vsyncpa [#allocation3], 0
    // Predicated region
    $region2: #{tpu_custom_call.1} parent=1 // pred_check
      _
    $region3: #{tpu_custom_call.1} parent=1 // pred_check_branch
      %12 = sbr.rel (0) target = $region5
    $region4: #{tpu_custom_call.1} parent=1 // pred_region
      _
    $region5: #{tpu_custom_call.1} parent=1 // pred_fallthru
      _
    // Predicated region
    $region6: #{tpu_custom_call.1} parent=1 // pred_check
      _
    $region7: #{tpu_custom_call.1} parent=1 // pred_check_branch
      %14 = sbr.rel (0) target = $region9
    $region8: #{tpu_custom_call.1} parent=1 // pred_region
      _
    $region9: #{tpu_custom_call.1} parent=1 // pred_fallthru
      _
    // Predicated region
    $region10: #{tpu_custom_call.1} parent=1 // pred_check
      _
    $region11: #{tpu_custom_call.1} parent=1 // pred_check_branch
      %16 = sbr.rel (0) target = $region13
    $region12: #{tpu_custom_call.1} parent=1 // pred_region
      _
    $region13: #{tpu_custom_call.1} parent=1 // pred_fallthru
      _
    // Predicated region
    $region14: #{tpu_custom_call.1} parent=1 // pred_check
      _
    $region15: #{tpu_custom_call.1} parent=1 // pred_check_branch
      %18 = sbr.rel (0) target = $region17
    $region16: #{tpu_custom_call.1} parent=1 // pred_region
      _
    $region17: #{tpu_custom_call.1} parent=1 // pred_fallthru
      _
    // Predicated region
    $region18: #{tpu_custom_call.1} parent=1 // pred_check
      _
    $region19: #{tpu_custom_call.1} parent=1 // pred_check_branch
      %20 = sbr.rel (0) target = $region21
    $region20: #{tpu_custom_call.1} parent=1 // pred_region
      _
    $region21: #{tpu_custom_call.1} parent=1 // pred_fallthru
      _
    %v22 = vld [vmem:[%s3] sm:$0xf]
    %v23 = vld [vmem:[%s3 + $0x4] sm:$0xf]
    %v24 = vld [vmem:[%s3 + $0x8] sm:$0xf]
    %v25 = vld [vmem:[%s3 + $0xc] sm:$0xf]
    %v26 = vld [vmem:[%s4] sm:$0x1]
    %v27 = vld [vmem:[%s1] sm:$0xf]
    %v28 = vld [vmem:[%s1 + $0x4] sm:$0xf]
    %v29 = vld [vmem:[%s1 + $0x8] sm:$0xf]
    %v30 = vld [vmem:[%s1 + $0xc] sm:$0xf]
    %v31 = vld [vmem:[%s1 + $0x10] sm:$0xf]
    %v32 = vld [vmem:[%s1 + $0x14] sm:$0xf]
    %v33 = vld [vmem:[%s1 + $0x18] sm:$0xf]
    %v34 = vld [vmem:[%s1 + $0x1c] sm:$0xf]
    %v35 = vld [vmem:[%s1 + $0x20] sm:$0xf]
    %v36 = vld [vmem:[%s1 + $0x24] sm:$0xf]
    %v37 = vld [vmem:[%s1 + $0x28] sm:$0xf]
    %v38 = vld [vmem:[%s1 + $0x2c] sm:$0xf]
    %v39 = vld [vmem:[%s1 + $0x30] sm:$0xf]
    %v40 = vld [vmem:[%s1 + $0x34] sm:$0xf]
    %v41 = vld [vmem:[%s1 + $0x38] sm:$0xf]
    %v42 = vld [vmem:[%s1 + $0x3c] sm:$0xf]
    %v43 = vld [vmem:[%s0] sm:$0xf]
    %v44 = vld [vmem:[%s0 + $0x4] sm:$0xf]
    %v61 = vunpack.c.l.b16 %v27
    %v62 = vunpack.c.l.b16 %v28
    %v63 = vunpack.c.l.b16 %v29
    %v64 = vunpack.c.l.b16 %v30
    %v65 = vunpack.c.l.b16 %v31
    %v66 = vunpack.c.l.b16 %v32
    %v67 = vunpack.c.l.b16 %v33
    %v68 = vunpack.c.l.b16 %v34
    %v69 = vunpack.c.l.b16 %v35
    %v70 = vunpack.c.l.b16 %v36
    %v71 = vunpack.c.l.b16 %v37
    %v72 = vunpack.c.l.b16 %v38
    %v73 = vunpack.c.l.b16 %v39
    %v74 = vunpack.c.l.b16 %v40
    %v75 = vunpack.c.l.b16 %v41
    %v76 = vunpack.c.l.b16 %v42
    %v77 = vpack.c.b16 %v62, %v61
    %v78 = vpack.c.b16 %v64, %v63
    %v79 = vpack.c.b16 %v66, %v65
    %v80 = vpack.c.b16 %v68, %v67
    %v81 = vpack.c.b16 %v70, %v69
    %v82 = vpack.c.b16 %v72, %v71
    %v83 = vpack.c.b16 %v74, %v73
    %v84 = vpack.c.b16 %v76, %v75
    %v87 = vunpack.c.l.b16 %v43
    %v88 = vunpack.c.l.b16 %v44
    %v89 = vpack.c.b16 %v88, %v87
    %v91 = vperm.slane %v26, 0
    %v97 = vunpack.c.l.b16 %v22
    %v98 = vunpack.c.l.b16 %v23
    %v99 = vunpack.c.l.b16 %v24
    %v100 = vunpack.c.l.b16 %v25
    %v101 = vpack.c.b16 %v98, %v97
    %v102 = vpack.c.b16 %v100, %v99
    %vm105 = vcmask 261120
    %v107 = vsel %vm105, %v77, 0
    %v110 = vsel %vm105, %v78, 0
    %v113 = vsel %vm105, %v79, 0
    %v116 = vsel %vm105, %v80, 0
    %v119 = vsel %vm105, %v81, 0
    %v122 = vsel %vm105, %v82, 0
    %v125 = vsel %vm105, %v83, 0
    %v128 = vsel %vm105, %v84, 0
    %v131 = vsel %vm105, %v89, 0
    %133 = vmatpush.bf16.msra.mxu0 0
    %134 = vmatpush.bf16.msra.mxu0 0
    %135 = vmatpush.bf16.msra.mxu0 0
    %136 = vmatpush.bf16.msra.mxu0 0
    %137 = vmatpush.bf16.msra.mxu0 0
    %138 = vmatpush.bf16.msra.mxu0 0
    %139 = vmatpush.bf16.msra.mxu0 %v102
    %140 = vmatpush.bf16.msra.mxu0 %v101
    %141 = vmatmul.bf16.gmra.mxu0 %v107
    %v142 = vpop.f32.mrf.mxu0
    %v143 = vadd.f32 %v91, %v142
    %v144 = vpop.f32.mrf.mxu0
    %v145 = vadd.f32 %v91, %v144
    %146 = vmatmul.bf16.gmra.mxu0 %v110
    %v147 = vpop.f32.mrf.mxu0
    %v148 = vadd.f32 %v91, %v147
    %v149 = vpop.f32.mrf.mxu0
    %v150 = vadd.f32 %v91, %v149
    %151 = vmatmul.bf16.gmra.mxu0 %v113
    %v152 = vpop.f32.mrf.mxu0
    %v153 = vadd.f32 %v91, %v152
    %v154 = vpop.f32.mrf.mxu0
    %v155 = vadd.f32 %v91, %v154
    %156 = vmatmul.bf16.gmra.mxu0 %v116
    %v157 = vpop.f32.mrf.mxu0
    %v158 = vadd.f32 %v91, %v157
    %v159 = vpop.f32.mrf.mxu0
    %v160 = vadd.f32 %v91, %v159
    %161 = vmatmul.bf16.gmra.mxu0 %v119
    %v162 = vpop.f32.mrf.mxu0
    %v163 = vadd.f32 %v91, %v162
    %v164 = vpop.f32.mrf.mxu0
    %v165 = vadd.f32 %v91, %v164
    %166 = vmatmul.bf16.gmra.mxu0 %v122
    %v167 = vpop.f32.mrf.mxu0
    %v168 = vadd.f32 %v91, %v167
    %v169 = vpop.f32.mrf.mxu0
    %v170 = vadd.f32 %v91, %v169
    %171 = vmatmul.bf16.gmra.mxu0 %v125
    %v172 = vpop.f32.mrf.mxu0
    %v173 = vadd.f32 %v91, %v172
    %v174 = vpop.f32.mrf.mxu0
    %v175 = vadd.f32 %v91, %v174
    %176 = vmatmul.bf16.gmra.mxu0 %v128
    %v177 = vpop.f32.mrf.mxu0
    %v178 = vadd.f32 %v91, %v177
    %v179 = vpop.f32.mrf.mxu0
    %v180 = vadd.f32 %v91, %v179
    %181 = vmatmul.bf16.gmra.mxu0 %v131
    %v182 = vpop.f32.mrf.mxu0
    %v183 = vadd.f32 %v91, %v182
    %v184 = vpop.f32.mrf.mxu0
    %v185 = vadd.f32 %v91, %v184
    %186 = vdwg.mxu0
    %v189 = vrot.slane %v183, 1
    %v190 = vrot.slane %v183, 2
    %v191 = vrot.slane %v183, 3
    %v192 = vrot.slane %v183, 4
    %v193 = vrot.slane %v183, 5
    %v194 = vrot.slane %v183, 6
    %v195 = vrot.slane %v183, 7
    %v196 = vrot.slane %v185, 1
    %v197 = vrot.slane %v185, 2
    %v198 = vrot.slane %v185, 3
    %v199 = vrot.slane %v185, 4
    %v200 = vrot.slane %v185, 5
    %v201 = vrot.slane %v185, 6
    %v202 = vrot.slane %v185, 7
    %v203 = vperm.slane %v183, 0
    %v204 = vperm.slane %v189, 0
    %v205 = vperm.slane %v190, 0
    %v206 = vperm.slane %v191, 0
    %v207 = vperm.slane %v192, 0
    %v208 = vperm.slane %v193, 0
    %v209 = vperm.slane %v194, 0
    %v210 = vperm.slane %v195, 0
    %v211 = vperm.slane %v185, 0
    %v212 = vperm.slane %v196, 0
    %v213 = vperm.slane %v197, 0
    %v214 = vperm.slane %v198, 0
    %v215 = vperm.slane %v199, 0
    %v216 = vperm.slane %v200, 0
    %v217 = vperm.slane %v201, 0
    %v218 = vperm.slane %v202, 0
    %v235 = vmul.f32 %v203, %v143
    %v236 = vmul.f32 %v204, %v145
    %v237 = vmul.f32 %v205, %v148
    %v238 = vmul.f32 %v206, %v150
    %v239 = vmul.f32 %v207, %v153
    %v240 = vmul.f32 %v208, %v155
    %v241 = vmul.f32 %v209, %v158
    %v242 = vmul.f32 %v210, %v160
    %v243 = vmul.f32 %v211, %v163
    %v244 = vmul.f32 %v212, %v165
    %v245 = vmul.f32 %v213, %v168
    %v246 = vmul.f32 %v214, %v170
    %v247 = vmul.f32 %v215, %v173
    %v248 = vmul.f32 %v216, %v175
    %v249 = vmul.f32 %v217, %v178
    %v250 = vmul.f32 %v218, %v180
    %251 = vadd.xlane.f32.xlu0 %v235
    %v252 = vpop.xlane.xlu0 %251
    %253 = vadd.xlane.f32.xlu0 %v236
    %v254 = vpop.xlane.xlu0 %253
    %255 = vadd.xlane.f32.xlu0 %v237
    %v256 = vpop.xlane.xlu0 %255
    %257 = vadd.xlane.f32.xlu0 %v238
    %v258 = vpop.xlane.xlu0 %257
    %259 = vadd.xlane.f32.xlu0 %v239
    %v260 = vpop.xlane.xlu0 %259
    %261 = vadd.xlane.f32.xlu0 %v240
    %v262 = vpop.xlane.xlu0 %261
    %263 = vadd.xlane.f32.xlu0 %v241
    %v264 = vpop.xlane.xlu0 %263
    %265 = vadd.xlane.f32.xlu0 %v242
    %v266 = vpop.xlane.xlu0 %265
    %267 = vadd.xlane.f32.xlu0 %v243
    %v268 = vpop.xlane.xlu0 %267
    %269 = vadd.xlane.f32.xlu0 %v244
    %v270 = vpop.xlane.xlu0 %269
    %271 = vadd.xlane.f32.xlu0 %v245
    %v272 = vpop.xlane.xlu0 %271
    %273 = vadd.xlane.f32.xlu0 %v246
    %v274 = vpop.xlane.xlu0 %273
    %275 = vadd.xlane.f32.xlu0 %v247
    %v276 = vpop.xlane.xlu0 %275
    %277 = vadd.xlane.f32.xlu0 %v248
    %v278 = vpop.xlane.xlu0 %277
    %279 = vadd.xlane.f32.xlu0 %v249
    %v280 = vpop.xlane.xlu0 %279
    %281 = vadd.xlane.f32.xlu0 %v250
    %v282 = vpop.xlane.xlu0 %281
    %v299 = vlaneseq
    %v300 = vand.u32 %v299, 127
    %v301 = vperm.slane %v252, %v300
    %v302 = vperm.slane %v254, %v300
    %v303 = vperm.slane %v256, %v300
    %v304 = vperm.slane %v258, %v300
    %v305 = vperm.slane %v260, %v300
    %v306 = vperm.slane %v262, %v300
    %v307 = vperm.slane %v264, %v300
    %v308 = vperm.slane %v266, %v300
    %v309 = vperm.slane %v268, %v300
    %v310 = vperm.slane %v270, %v300
    %v311 = vperm.slane %v272, %v300
    %v312 = vperm.slane %v274, %v300
    %v313 = vperm.slane %v276, %v300
    %v314 = vperm.slane %v278, %v300
    %v315 = vperm.slane %v280, %v300
    %v316 = vperm.slane %v282, %v300
    %vm317 = vcmask 1041409
    %v318 = vsel %vm317, %v302, %v301
    %vm319 = vcmask 1042434
    %v320 = vsel %vm319, %v303, %v318
    %vm321 = vcmask 1043459
    %v322 = vsel %vm321, %v304, %v320
    %vm323 = vcmask 1044484
    %v324 = vsel %vm323, %v305, %v322
    %vm325 = vcmask 1045509
    %v326 = vsel %vm325, %v306, %v324
    %vm327 = vcmask 1046534
    %v328 = vsel %vm327, %v307, %v326
    %vm329 = vcmask 1047559
    %v330 = vsel %vm329, %v308, %v328
    %v331 = vsel %vm317, %v310, %v309
    %v332 = vsel %vm319, %v311, %v331
    %v333 = vsel %vm321, %v312, %v332
    %v334 = vsel %vm323, %v313, %v333
    %v335 = vsel %vm325, %v314, %v334
    %v336 = vsel %vm327, %v315, %v335
    %v337 = vsel %vm329, %v316, %v336
    %vm340 = vcmask 64512
    %v341 = vsel %vm340, %v330, -inf
    %342 = vmax.xlane.f32.xlu0 %v341
    %v343 = vpop.xlane.xlu0 %342
    %v344 = vsel %vm340, %v337, -inf
    %345 = vmax.xlane.f32.xlu0 %v344
    %v346 = vpop.xlane.xlu0 %345
    %v349 = vperm.slane %v343, 0
    %v350 = vperm.slane %v343, 1
    %v351 = vperm.slane %v343, 2
    %v352 = vperm.slane %v343, 3
    %v353 = vperm.slane %v343, 4
    %v354 = vperm.slane %v343, 5
    %v355 = vperm.slane %v343, 6
    %v356 = vperm.slane %v343, 7
    %v357 = vperm.slane %v346, 0
    %v358 = vperm.slane %v346, 1
    %v359 = vperm.slane %v346, 2
    %v360 = vperm.slane %v346, 3
    %v361 = vperm.slane %v346, 4
    %v362 = vperm.slane %v346, 5
    %v363 = vperm.slane %v346, 6
    %v364 = vperm.slane %v346, 7
    %v381 = vsub.f32 %v252, %v349
    %v382 = vsub.f32 %v254, %v350
    %v383 = vsub.f32 %v256, %v351
    %v384 = vsub.f32 %v258, %v352
    %v385 = vsub.f32 %v260, %v353
    %v386 = vsub.f32 %v262, %v354
    %v387 = vsub.f32 %v264, %v355
    %v388 = vsub.f32 %v266, %v356
    %v389 = vsub.f32 %v268, %v357
    %v390 = vsub.f32 %v270, %v358
    %v391 = vsub.f32 %v272, %v359
    %v392 = vsub.f32 %v274, %v360
    %v393 = vsub.f32 %v276, %v361
    %v394 = vsub.f32 %v278, %v362
    %v395 = vsub.f32 %v280, %v363
    %v396 = vsub.f32 %v282, %v364
    %v397 = vmul.f32 %v381, 1.442695
    %v398 = vpow.pop %v397
    %v399 = vmul.f32 %v382, 1.442695
    %v400 = vpow.pop %v399
    %v401 = vmul.f32 %v383, 1.442695
    %v402 = vpow.pop %v401
    %v403 = vmul.f32 %v384, 1.442695
    %v404 = vpow.pop %v403
    %v405 = vmul.f32 %v385, 1.442695
    %v406 = vpow.pop %v405
    %v407 = vmul.f32 %v386, 1.442695
    %v408 = vpow.pop %v407
    %v409 = vmul.f32 %v387, 1.442695
    %v410 = vpow.pop %v409
    %v411 = vmul.f32 %v388, 1.442695
    %v412 = vpow.pop %v411
    %v413 = vmul.f32 %v389, 1.442695
    %v414 = vpow.pop %v413
    %v415 = vmul.f32 %v390, 1.442695
    %v416 = vpow.pop %v415
    %v417 = vmul.f32 %v391, 1.442695
    %v418 = vpow.pop %v417
    %v419 = vmul.f32 %v392, 1.442695
    %v420 = vpow.pop %v419
    %v421 = vmul.f32 %v393, 1.442695
    %v422 = vpow.pop %v421
    %v423 = vmul.f32 %v394, 1.442695
    %v424 = vpow.pop %v423
    %v425 = vmul.f32 %v395, 1.442695
    %v426 = vpow.pop %v425
    %v427 = vmul.f32 %v396, 1.442695
    %v428 = vpow.pop %v427
    %445 = vset.pattern.permute.xlu0 0
    %446 = vperm.xlu0 %445, %v398
    %v447 = vpop.permute.xlu0 %446
    %448 = vset.pattern.permute.xlu0 0
    %449 = vperm.xlu0 %448, %v400
    %v450 = vpop.permute.xlu0 %449
    %451 = vset.pattern.permute.xlu0 0
    %452 = vperm.xlu0 %451, %v402
    %v453 = vpop.permute.xlu0 %452
    %454 = vset.pattern.permute.xlu0 0
    %455 = vperm.xlu0 %454, %v404
    %v456 = vpop.permute.xlu0 %455
    %457 = vset.pattern.permute.xlu0 0
    %458 = vperm.xlu0 %457, %v406
    %v459 = vpop.permute.xlu0 %458
    %460 = vset.pattern.permute.xlu0 0
    %461 = vperm.xlu0 %460, %v408
    %v462 = vpop.permute.xlu0 %461
    %463 = vset.pattern.permute.xlu0 0
    %464 = vperm.xlu0 %463, %v410
    %v465 = vpop.permute.xlu0 %464
    %466 = vset.pattern.permute.xlu0 0
    %467 = vperm.xlu0 %466, %v412
    %v468 = vpop.permute.xlu0 %467
    %469 = vset.pattern.permute.xlu0 0
    %470 = vperm.xlu0 %469, %v414
    %v471 = vpop.permute.xlu0 %470
    %472 = vset.pattern.permute.xlu0 0
    %473 = vperm.xlu0 %472, %v416
    %v474 = vpop.permute.xlu0 %473
    %475 = vset.pattern.permute.xlu0 0
    %476 = vperm.xlu0 %475, %v418
    %v477 = vpop.permute.xlu0 %476
    %478 = vset.pattern.permute.xlu0 0
    %479 = vperm.xlu0 %478, %v420
    %v480 = vpop.permute.xlu0 %479
    %481 = vset.pattern.permute.xlu0 0
    %482 = vperm.xlu0 %481, %v422
    %v483 = vpop.permute.xlu0 %482
    %484 = vset.pattern.permute.xlu0 0
    %485 = vperm.xlu0 %484, %v424
    %v486 = vpop.permute.xlu0 %485
    %487 = vset.pattern.permute.xlu0 0
    %488 = vperm.xlu0 %487, %v426
    %v489 = vpop.permute.xlu0 %488
    %490 = vset.pattern.permute.xlu0 0
    %491 = vperm.xlu0 %490, %v428
    %v492 = vpop.permute.xlu0 %491
    %v493 = vperm.slane %v447, %v300
    %v494 = vperm.slane %v450, %v300
    %v495 = vperm.slane %v453, %v300
    %v496 = vperm.slane %v456, %v300
    %v497 = vperm.slane %v459, %v300
    %v498 = vperm.slane %v462, %v300
    %v499 = vperm.slane %v465, %v300
    %v500 = vperm.slane %v468, %v300
    %v501 = vperm.slane %v471, %v300
    %v502 = vperm.slane %v474, %v300
    %v503 = vperm.slane %v477, %v300
    %v504 = vperm.slane %v480, %v300
    %v505 = vperm.slane %v483, %v300
    %v506 = vperm.slane %v486, %v300
    %v507 = vperm.slane %v489, %v300
    %v508 = vperm.slane %v492, %v300
    %v509 = vsel %vm317, %v494, %v493
    %v510 = vsel %vm319, %v495, %v509
    %v511 = vsel %vm321, %v496, %v510
    %v512 = vsel %vm323, %v497, %v511
    %v513 = vsel %vm325, %v498, %v512
    %v514 = vsel %vm327, %v499, %v513
    %v515 = vsel %vm329, %v500, %v514
    %v516 = vsel %vm317, %v502, %v501
    %v517 = vsel %vm319, %v503, %v516
    %v518 = vsel %vm321, %v504, %v517
    %v519 = vsel %vm323, %v505, %v518
    %v520 = vsel %vm325, %v506, %v519
    %v521 = vsel %vm327, %v507, %v520
    %v522 = vsel %vm329, %v508, %v521
    %v525 = vsel %vm340, %v515, 0.0
    %526 = vadd.xlane.f32.xlu0 %v525
    %v527 = vpop.xlane.xlu0 %526
    %v528 = vsel %vm340, %v522, 0.0
    %529 = vadd.xlane.f32.xlu0 %v528
    %v530 = vpop.xlane.xlu0 %529
    %v531 = vrcp.pop %v527
    %v532 = vrcp.pop %v530
    %v535 = vperm.slane %v531, 0
    %v536 = vperm.slane %v531, 1
    %v537 = vperm.slane %v531, 2
    %v538 = vperm.slane %v531, 3
    %v539 = vperm.slane %v531, 4
    %v540 = vperm.slane %v531, 5
    %v541 = vperm.slane %v531, 6
    %v542 = vperm.slane %v531, 7
    %v543 = vperm.slane %v532, 0
    %v544 = vperm.slane %v532, 1
    %v545 = vperm.slane %v532, 2
    %v546 = vperm.slane %v532, 3
    %v547 = vperm.slane %v532, 4
    %v548 = vperm.slane %v532, 5
    %v549 = vperm.slane %v532, 6
    %v550 = vperm.slane %v532, 7
    %v567 = vmul.f32 %v398, %v535
    %v568 = vmul.f32 %v400, %v536
    %v569 = vmul.f32 %v402, %v537
    %v570 = vmul.f32 %v404, %v538
    %v571 = vmul.f32 %v406, %v539
    %v572 = vmul.f32 %v408, %v540
    %v573 = vmul.f32 %v410, %v541
    %v574 = vmul.f32 %v412, %v542
    %v575 = vmul.f32 %v414, %v543
    %v576 = vmul.f32 %v416, %v544
    %v577 = vmul.f32 %v418, %v545
    %v578 = vmul.f32 %v420, %v546
    %v579 = vmul.f32 %v422, %v547
    %v580 = vmul.f32 %v424, %v548
    %v581 = vmul.f32 %v426, %v549
    %v582 = vmul.f32 %v428, %v550
    %v583 = vld [vmem:[%s2] sm:$0xf]
    %v584 = vld [vmem:[%s2 + $0x4] sm:$0xf]
    %v585 = vld [vmem:[%s2 + $0x8] sm:$0xf]
    %v586 = vld [vmem:[%s2 + $0xc] sm:$0xf]
    %v587 = vld [vmem:[%s2 + $0x10] sm:$0xf]
    %v588 = vld [vmem:[%s2 + $0x14] sm:$0xf]
    %v589 = vld [vmem:[%s2 + $0x18] sm:$0xf]
    %v590 = vld [vmem:[%s2 + $0x1c] sm:$0xf]
    %v591 = vld [vmem:[%s2 + $0x20] sm:$0xf]
    %v592 = vld [vmem:[%s2 + $0x24] sm:$0xf]
    %v593 = vld [vmem:[%s2 + $0x28] sm:$0xf]
    %v594 = vld [vmem:[%s2 + $0x2c] sm:$0xf]
    %v595 = vld [vmem:[%s2 + $0x30] sm:$0xf]
    %v596 = vld [vmem:[%s2 + $0x34] sm:$0xf]
    %v597 = vld [vmem:[%s2 + $0x38] sm:$0xf]
    %v598 = vld [vmem:[%s2 + $0x3c] sm:$0xf]
    %v599 = vunpack.c.l.bf16 %v583
    %v600 = vunpack.c.l.bf16 %v584
    %v601 = vunpack.c.l.bf16 %v585
    %v602 = vunpack.c.l.bf16 %v586
    %v603 = vunpack.c.l.bf16 %v587
    %v604 = vunpack.c.l.bf16 %v588
    %v605 = vunpack.c.l.bf16 %v589
    %v606 = vunpack.c.l.bf16 %v590
    %v607 = vunpack.c.l.bf16 %v591
    %v608 = vunpack.c.l.bf16 %v592
    %v609 = vunpack.c.l.bf16 %v593
    %v610 = vunpack.c.l.bf16 %v594
    %v611 = vunpack.c.l.bf16 %v595
    %v612 = vunpack.c.l.bf16 %v596
    %v613 = vunpack.c.l.bf16 %v597
    %v614 = vunpack.c.l.bf16 %v598
    %616 = vset.pattern.permute.xlu0 0
    %617 = vperm.xlu0 %616, %v567
    %v618 = vpop.permute.xlu0 %617
    %621 = vset.pattern.permute.xlu0 0
    %622 = vperm.xlu0 %621, %v568
    %v623 = vpop.permute.xlu0 %622
    %626 = vset.pattern.permute.xlu0 0
    %627 = vperm.xlu0 %626, %v569
    %v628 = vpop.permute.xlu0 %627
    %631 = vset.pattern.permute.xlu0 0
    %632 = vperm.xlu0 %631, %v570
    %v633 = vpop.permute.xlu0 %632
    %636 = vset.pattern.permute.xlu0 0
    %637 = vperm.xlu0 %636, %v571
    %v638 = vpop.permute.xlu0 %637
    %641 = vset.pattern.permute.xlu0 0
    %642 = vperm.xlu0 %641, %v572
    %v643 = vpop.permute.xlu0 %642
    %646 = vset.pattern.permute.xlu0 0
    %647 = vperm.xlu0 %646, %v573
    %v648 = vpop.permute.xlu0 %647
    %651 = vset.pattern.permute.xlu0 0
    %652 = vperm.xlu0 %651, %v574
    %v653 = vpop.permute.xlu0 %652
    %656 = vset.pattern.permute.xlu0 0
    %657 = vperm.xlu0 %656, %v575
    %v658 = vpop.permute.xlu0 %657
    %661 = vset.pattern.permute.xlu0 0
    %662 = vperm.xlu0 %661, %v576
    %v663 = vpop.permute.xlu0 %662
    %666 = vset.pattern.permute.xlu0 0
    %667 = vperm.xlu0 %666, %v577
    %v668 = vpop.permute.xlu0 %667
    %671 = vset.pattern.permute.xlu0 0
    %672 = vperm.xlu0 %671, %v578
    %v673 = vpop.permute.xlu0 %672
    %676 = vset.pattern.permute.xlu0 0
    %677 = vperm.xlu0 %676, %v579
    %v678 = vpop.permute.xlu0 %677
    %681 = vset.pattern.permute.xlu0 0
    %682 = vperm.xlu0 %681, %v580
    %v683 = vpop.permute.xlu0 %682
    %686 = vset.pattern.permute.xlu0 0
    %687 = vperm.xlu0 %686, %v581
    %v688 = vpop.permute.xlu0 %687
    %691 = vset.pattern.permute.xlu0 0
    %692 = vperm.xlu0 %691, %v582
    %v693 = vpop.permute.xlu0 %692
    %v695 = vmul.f32 %v618, %v599
    %v696 = vmul.f32 %v623, %v600
    %v697 = vmul.f32 %v628, %v601
    %v698 = vmul.f32 %v633, %v602
    %v699 = vmul.f32 %v638, %v603
    %v700 = vmul.f32 %v643, %v604
    %v701 = vmul.f32 %v648, %v605
    %v702 = vmul.f32 %v653, %v606
    %v703 = vmul.f32 %v658, %v607
    %v704 = vmul.f32 %v663, %v608
    %v705 = vmul.f32 %v668, %v609
    %v706 = vmul.f32 %v673, %v610
    %v707 = vmul.f32 %v678, %v611
    %v708 = vmul.f32 %v683, %v612
    %v709 = vmul.f32 %v688, %v613
    %v710 = vmul.f32 %v693, %v614
    %v711 = vsel %vm105, %v695, 0.0
    %v712 = vrot.slane %v711, 4
    %v713 = vadd.f32 %v711, %v712
    %v714 = vrot.slane %v713, 2
    %v715 = vadd.f32 %v713, %v714
    %v716 = vrot.slane %v715, 1
    %v717 = vadd.f32 %v715, %v716
    %v718 = vsel %vm105, %v696, 0.0
    %v719 = vrot.slane %v718, 4
    %v720 = vadd.f32 %v718, %v719
    %v721 = vrot.slane %v720, 2
    %v722 = vadd.f32 %v720, %v721
    %v723 = vrot.slane %v722, 1
    %v724 = vadd.f32 %v722, %v723
    %v725 = vsel %vm105, %v697, 0.0
    %v726 = vrot.slane %v725, 4
    %v727 = vadd.f32 %v725, %v726
    %v728 = vrot.slane %v727, 2
    %v729 = vadd.f32 %v727, %v728
    %v730 = vrot.slane %v729, 1
    %v731 = vadd.f32 %v729, %v730
    %v732 = vsel %vm105, %v698, 0.0
    %v733 = vrot.slane %v732, 4
    %v734 = vadd.f32 %v732, %v733
    %v735 = vrot.slane %v734, 2
    %v736 = vadd.f32 %v734, %v735
    %v737 = vrot.slane %v736, 1
    %v738 = vadd.f32 %v736, %v737
    %v739 = vsel %vm105, %v699, 0.0
    %v740 = vrot.slane %v739, 4
    %v741 = vadd.f32 %v739, %v740
    %v742 = vrot.slane %v741, 2
    %v743 = vadd.f32 %v741, %v742
    %v744 = vrot.slane %v743, 1
    %v745 = vadd.f32 %v743, %v744
    %v746 = vsel %vm105, %v700, 0.0
    %v747 = vrot.slane %v746, 4
    %v748 = vadd.f32 %v746, %v747
    %v749 = vrot.slane %v748, 2
    %v750 = vadd.f32 %v748, %v749
    %v751 = vrot.slane %v750, 1
    %v752 = vadd.f32 %v750, %v751
    %v753 = vsel %vm105, %v701, 0.0
    %v754 = vrot.slane %v753, 4
    %v755 = vadd.f32 %v753, %v754
    %v756 = vrot.slane %v755, 2
    %v757 = vadd.f32 %v755, %v756
    %v758 = vrot.slane %v757, 1
    %v759 = vadd.f32 %v757, %v758
    %v760 = vsel %vm105, %v702, 0.0
    %v761 = vrot.slane %v760, 4
    %v762 = vadd.f32 %v760, %v761
    %v763 = vrot.slane %v762, 2
    %v764 = vadd.f32 %v762, %v763
    %v765 = vrot.slane %v764, 1
    %v766 = vadd.f32 %v764, %v765
    %v767 = vsel %vm105, %v703, 0.0
    %v768 = vrot.slane %v767, 4
    %v769 = vadd.f32 %v767, %v768
    %v770 = vrot.slane %v769, 2
    %v771 = vadd.f32 %v769, %v770
    %v772 = vrot.slane %v771, 1
    %v773 = vadd.f32 %v771, %v772
    %v774 = vsel %vm105, %v704, 0.0
    %v775 = vrot.slane %v774, 4
    %v776 = vadd.f32 %v774, %v775
    %v777 = vrot.slane %v776, 2
    %v778 = vadd.f32 %v776, %v777
    %v779 = vrot.slane %v778, 1
    %v780 = vadd.f32 %v778, %v779
    %v781 = vsel %vm105, %v705, 0.0
    %v782 = vrot.slane %v781, 4
    %v783 = vadd.f32 %v781, %v782
    %v784 = vrot.slane %v783, 2
    %v785 = vadd.f32 %v783, %v784
    %v786 = vrot.slane %v785, 1
    %v787 = vadd.f32 %v785, %v786
    %v788 = vsel %vm105, %v706, 0.0
    %v789 = vrot.slane %v788, 4
    %v790 = vadd.f32 %v788, %v789
    %v791 = vrot.slane %v790, 2
    %v792 = vadd.f32 %v790, %v791
    %v793 = vrot.slane %v792, 1
    %v794 = vadd.f32 %v792, %v793
    %v795 = vsel %vm105, %v707, 0.0
    %v796 = vrot.slane %v795, 4
    %v797 = vadd.f32 %v795, %v796
    %v798 = vrot.slane %v797, 2
    %v799 = vadd.f32 %v797, %v798
    %v800 = vrot.slane %v799, 1
    %v801 = vadd.f32 %v799, %v800
    %v802 = vsel %vm105, %v708, 0.0
    %v803 = vrot.slane %v802, 4
    %v804 = vadd.f32 %v802, %v803
    %v805 = vrot.slane %v804, 2
    %v806 = vadd.f32 %v804, %v805
    %v807 = vrot.slane %v806, 1
    %v808 = vadd.f32 %v806, %v807
    %v809 = vsel %vm105, %v709, 0.0
    %v810 = vrot.slane %v809, 4
    %v811 = vadd.f32 %v809, %v810
    %v812 = vrot.slane %v811, 2
    %v813 = vadd.f32 %v811, %v812
    %v814 = vrot.slane %v813, 1
    %v815 = vadd.f32 %v813, %v814
    %v816 = vsel %vm105, %v710, 0.0
    %v817 = vrot.slane %v816, 4
    %v818 = vadd.f32 %v816, %v817
    %v819 = vrot.slane %v818, 2
    %v820 = vadd.f32 %v818, %v819
    %v821 = vrot.slane %v820, 1
    %v822 = vadd.f32 %v820, %v821
    %v823 = vpack.c.bf16 %v717, %v717
    %v824 = vpack.c.bf16 %v724, %v724
    %v825 = vpack.c.bf16 %v731, %v731
    %v826 = vpack.c.bf16 %v738, %v738
    %v827 = vpack.c.bf16 %v745, %v745
    %v828 = vpack.c.bf16 %v752, %v752
    %v829 = vpack.c.bf16 %v759, %v759
    %v830 = vpack.c.bf16 %v766, %v766
    %v831 = vpack.c.bf16 %v773, %v773
    %v832 = vpack.c.bf16 %v780, %v780
    %v833 = vpack.c.bf16 %v787, %v787
    %v834 = vpack.c.bf16 %v794, %v794
    %v835 = vpack.c.bf16 %v801, %v801
    %v836 = vpack.c.bf16 %v808, %v808
    %v837 = vpack.c.bf16 %v815, %v815
    %v838 = vpack.c.bf16 %v822, %v822
    %v855 = vunpack.c.l.b16 %v823
    %v856 = vunpack.c.l.b16 %v824
    %v857 = vunpack.c.l.b16 %v825
    %v858 = vunpack.c.l.b16 %v826
    %v859 = vunpack.c.l.b16 %v827
    %v860 = vunpack.c.l.b16 %v828
    %v861 = vunpack.c.l.b16 %v829
    %v862 = vunpack.c.l.b16 %v830
    %v863 = vunpack.c.l.b16 %v831
    %v864 = vunpack.c.l.b16 %v832
    %v865 = vunpack.c.l.b16 %v833
    %v866 = vunpack.c.l.b16 %v834
    %v867 = vunpack.c.l.b16 %v835
    %v868 = vunpack.c.l.b16 %v836
    %v869 = vunpack.c.l.b16 %v837
    %v870 = vunpack.c.l.b16 %v838
    %v871 = vsel %vm317, %v856, %v855
    %v872 = vsel %vm319, %v857, %v871
    %v873 = vsel %vm321, %v858, %v872
    %v874 = vsel %vm323, %v859, %v873
    %v875 = vsel %vm325, %v860, %v874
    %v876 = vsel %vm327, %v861, %v875
    %v877 = vsel %vm329, %v862, %v876
    %v878 = vsel %vm317, %v864, %v863
    %v879 = vsel %vm319, %v865, %v878
    %v880 = vsel %vm321, %v866, %v879
    %v881 = vsel %vm323, %v867, %v880
    %v882 = vsel %vm325, %v868, %v881
    %v883 = vsel %vm327, %v869, %v882
    %v884 = vsel %vm329, %v870, %v883
    %v885 = vpack.c.b16 %v884, %v877
    %v887 = vsel %vm105, %v885, 0
    %889 = vmatpush.bf16.msra.mxu0 0
    %890 = vmatpush.bf16.msra.mxu0 0
    %891 = vmatpush.bf16.msra.mxu0 0
    %892 = vmatpush.bf16.msra.mxu0 0
    %893 = vmatpush.bf16.msra.mxu0 0
    %894 = vmatpush.bf16.msra.mxu0 0
    %895 = vmatpush.bf16.msra.mxu0 %v102
    %896 = vmatpush.bf16.msra.mxu0 %v101
    %897 = vmatmul.bf16.gmra.mxu0 %v887
    %v898 = vpop.f32.mrf.mxu0
    %v899 = vadd.f32 %v91, %v898
    %v900 = vpop.f32.mrf.mxu0
    %v901 = vadd.f32 %v91, %v900
    %902 = vdwg.mxu0
    %903 = vst [vmem:[#allocation2] sm:$0xff] %v899
    %904 = vst [vmem:[#allocation2 + $0x8] sm:$0xff] %v901
    // Predicated region
    $region22: #{tpu_custom_call.1} parent=1 // pred_check
      _
    $region23: #{tpu_custom_call.1} parent=1 // pred_check_branch
      %906 = sbr.rel (0) target = $region25
    $region24: #{tpu_custom_call.1} parent=1 // pred_region
      %908 = vsyncadd [#allocation3], 0
      %s909 = sshll.u32 [#allocation2], 4
      %s910 = int_to_ptr.vmem [resolvable:$true] %s909
      %s911 = sshll.u32 %s5, 4
      %s912 = int_to_ptr.hbm [resolvable:$true] %s911
      %917 = dma.vmem_to_hbm [thread:$0]  %s910, 256, %s912, [#allocation3], 128, 128, 8
    $region25: #{tpu_custom_call.1} parent=1 // pred_fallthru
      _
    // Predicated region
    $region26: #{tpu_custom_call.1} parent=1 // pred_check
      _
    $region27: #{tpu_custom_call.1} parent=1 // pred_check_branch
      %919 = sbr.rel (0) target = $region29
    $region28: #{tpu_custom_call.1} parent=1 // pred_region
      %921 = dma.done [#allocation3], 256
    $region29: #{tpu_custom_call.1} parent=1 // pred_fallthru
      _
    %922 = vsyncpa [#allocation3], 1

</llo_original>
